<compile_context>
chip_gen: v7x
topology: tpu7x:2x2x1
jax: 0.10.0
libtpu: 0.0.40
codegen_flags: <defaults>
</compile_context>

<pallas_src>
import jax
import jax.numpy as jnp
from jax.experimental import pallas as pl
from jax.experimental.pallas import tpu as pltpu


def _round_up(x, m):
    return ((x + m - 1) // m) * m


# ----------------------------------------------------------------------------
# Kernels (features on sublanes, samples M on lanes)
# ----------------------------------------------------------------------------
def _make_gabor_kernel_complex(n_pad: int, omega0: float, sigma0: float):
    """Complex-linear WIRE layer.  n_pad = padded out_features."""
    omega0 = float(omega0)
    s2 = float(sigma0) * float(sigma0)          # sigma0^2 folded on host

    def kernel(xT_ref, w2_ref, b2_ref, o_ref):
        # xT: (2K, tl)   W2: (2N, 2K)   b2: (2N, 1)   o: (2N, tl)
        # Single MXU dot yields the packed lin = [lin_re ; lin_im] directly.
        lin = jnp.dot(w2_ref[...], xT_ref[...],
                      preferred_element_type=jnp.float32) + b2_ref[...]
        lin_re = lin[:n_pad, :]
        lin_im = lin[n_pad:, :]
        mag = jnp.exp(-omega0 * lin_im
                      - s2 * (lin_re * lin_re + lin_im * lin_im))
        phase = omega0 * lin_re
        # Two static, sublane-aligned, full-lane-width stores (no concatenate).
        o_ref[:n_pad, :] = mag * jnp.cos(phase)
        o_ref[n_pad:, :] = mag * jnp.sin(phase)

    return kernel


def _make_gabor_kernel_first(n_pad: int, omega0: float, sigma0: float):
    """Real-linear (is_first=True) WIRE layer fast path."""
    omega0 = float(omega0)
    s2 = float(sigma0) * float(sigma0)

    def kernel(xT_ref, w_ref, b_ref, o_ref):
        # xT: (K, tl)   W: (N, K)   b: (N, 1)   o: (2N, tl)
        lin = jnp.dot(w_ref[...], xT_ref[...],
                      preferred_element_type=jnp.float32) + b_ref[...]
        mag = jnp.exp(-s2 * (lin * lin))
        phase = omega0 * lin
        o_ref[:n_pad, :] = mag * jnp.cos(phase)
        o_ref[n_pad:, :] = mag * jnp.sin(phase)

    return kernel


# ----------------------------------------------------------------------------
# Packed / transposed pallas_call wrapper
# ----------------------------------------------------------------------------
def complex_gabor_packed_t(xT, w_packed, b_packed, omega0, sigma0,
                           *, is_first=False, tl=8192):
    """Packed, transposed forward pass.

    xT       : (2*Kp, M) f32  [Re(x).T ; Im(x).T]   (or (Kp, M) if is_first)
    w_packed : (2*Np, 2*Kp) f32 = [[wr,-wi],[wi,wr]]  (or (Np, Kp) if is_first)
    b_packed : (2*Np, 1) f32                          (or (Np, 1) if is_first)
    Returns (2*Np, M) f32: rows [0:Np] = Re(out).T, rows [Np:2Np] = Im(out).T.
    """
    K2, M = xT.shape
    n_pad = w_packed.shape[0] // (1 if is_first else 2)
    out_rows = 2 * n_pad

    # Lane tile: big to amortize the ~0.35us/step grid overhead, multiple of 128
    # so stores are unmasked, capped at padded M.
    tl_eff = min(int(tl), _round_up(M, 128))
    tl_eff = max(_round_up(tl_eff, 128), 128)
    m_pad = _round_up(M, tl_eff)
    if m_pad != M:
        xT = jnp.pad(xT, ((0, 0), (0, m_pad - M)))

    make_kernel = _make_gabor_kernel_first if is_first else _make_gabor_kernel_complex
    kernel = make_kernel(n_pad, omega0, sigma0)

    # Double-buffered input+output tiles + weights, with slack; clamp to a level
    # that is safe on every generation (v7x has 64 MiB physical VMEM per TC).
    tile_bytes = 4 * tl_eff * (K2 + out_rows)
    vmem_limit = int(min(max(2 * tile_bytes + (4 << 20), 32 << 20), 64 << 20))

    out = pl.pallas_call(
        kernel,
        out_shape=jax.ShapeDtypeStruct((out_rows, m_pad), jnp.float32),
        grid=(m_pad // tl_eff,),
        in_specs=[
            pl.BlockSpec((K2, tl_eff), lambda i: (0, i)),        # activations
            pl.BlockSpec(w_packed.shape, lambda i: (0, 0)),      # packed weight
            pl.BlockSpec(b_packed.shape, lambda i: (0, 0)),      # packed bias
        ],
        out_specs=pl.BlockSpec((out_rows, tl_eff), lambda i: (0, i)),
        compiler_params=pltpu.CompilerParams(
            dimension_semantics=("parallel",),
            vmem_limit_bytes=vmem_limit),
    )(xT, w_packed, b_packed)

    return out[:, :M]


# ----------------------------------------------------------------------------
# Parameter packing (torch.nn.Linear layout -> packed planes, padded to 8)
# ----------------------------------------------------------------------------
def pack_gabor_params(w, b):
    """Complex (out=N, in=K) weight / (N,) bias -> W2 (2Np, 2Kp), b2 (2Np, 1)."""
    w = jnp.asarray(w, jnp.complex64)
    b = jnp.asarray(b, jnp.complex64)
    N, K = w.shape
    Np, Kp = _round_up(N, 8), _round_up(K, 8)
    wr = jnp.zeros((Np, Kp), jnp.float32).at[:N, :K].set(jnp.real(w))
    wi = jnp.zeros((Np, Kp), jnp.float32).at[:N, :K].set(jnp.imag(w))
    br = jnp.zeros((Np,), jnp.float32).at[:N].set(jnp.real(b))
    bi = jnp.zeros((Np,), jnp.float32).at[:N].set(jnp.imag(b))
    w2 = jnp.concatenate(
        [jnp.concatenate([wr, -wi], axis=1),
         jnp.concatenate([wi, wr], axis=1)], axis=0)             # (2Np, 2Kp)
    b2 = jnp.concatenate([br, bi]).reshape(2 * Np, 1)
    return w2, b2, N, K, Np, Kp


def pack_gabor_params_first(w, b):
    """Real (out=N, in=K) weight / (N,) bias -> W (Np, Kp), b (Np, 1)."""
    w = jnp.asarray(w, jnp.float32)
    b = jnp.asarray(b, jnp.float32)
    N, K = w.shape
    Np, Kp = _round_up(N, 8), _round_up(K, 8)
    wp = jnp.zeros((Np, Kp), jnp.float32).at[:N, :K].set(w)
    bp = jnp.zeros((Np, 1), jnp.float32).at[:N, 0].set(b)
    return wp, bp, N, K, Np, Kp


# ----------------------------------------------------------------------------
# Module-equivalent convenience wrapper (complex-in / complex-out)
# ----------------------------------------------------------------------------
def complex_gabor_layer(x, w, b, omega0, sigma0, *, is_first=False, tl=8192):
    """Matches ComplexGaborLayer.forward for a 2D (M, in_features) input.

    is_first=False: x/w/b complex64.   is_first=True: x/w/b real float32.
    For multi-layer WIRE nets, feed complex_gabor_packed_t directly with the
    previous layer's packed (2Np, M) output to avoid complex64 round-trips.
    """
    M = x.shape[0]
    if is_first:
        wp, bp, N, K, Np, Kp = pack_gabor_params_first(w, b)
        xr = jnp.asarray(jnp.real(jnp.asarray(x)), jnp.float32)
        xT = jnp.zeros((Kp, M), jnp.float32).at[:K, :].set(xr.T)
        out2 = complex_gabor_packed_t(xT, wp, bp, omega0, sigma0,
                                      is_first=True, tl=tl)
    else:
        w2, b2, N, K, Np, Kp = pack_gabor_params(w, b)
        xc = jnp.asarray(x, jnp.complex64)
        xT = (jnp.zeros((2 * Kp, M), jnp.float32)
              .at[:K, :].set(jnp.real(xc).T)
              .at[Kp:Kp + K, :].set(jnp.imag(xc).T))
        out2 = complex_gabor_packed_t(xT, w2, b2, omega0, sigma0,
                                      is_first=False, tl=tl)
    return (out2[:N, :] + 1j * out2[Np:Np + N, :]).T.astype(jnp.complex64)


def reference(x, w, b, omega0, sigma0):
    lin = x @ w.T + b
    return jnp.exp(1j * omega0 * lin - jnp.abs(sigma0 * lin) ** 2)


if __name__ == "__main__":
    # Small shapes consistent with the module: M coordinate samples through a
    # 32->32 WIRE layer.  M deliberately NOT a multiple of 128 to exercise the
    # lane-padding path.
    M, IN_F, OUT_F = 200, 32, 32
    OMEGA0, SIGMA0 = 10.0, 40.0

    key = jax.random.PRNGKey(0)
    ks = jax.random.split(key, 8)
    bound = 1.0 / jnp.sqrt(IN_F)

    # ---- complex (is_first=False) layer ----
    w = (jax.random.uniform(ks[0], (OUT_F, IN_F), jnp.float32, -bound, bound)
         + 1j * jax.random.uniform(ks[1], (OUT_F, IN_F), jnp.float32, -bound, bound)
         ).astype(jnp.complex64)
    b = (jax.random.uniform(ks[2], (OUT_F,), jnp.float32, -bound, bound)
         + 1j * jax.random.uniform(ks[3], (OUT_F,), jnp.float32, -bound, bound)
         ).astype(jnp.complex64)
    # Small inputs so the Gaussian term (sigma0=40) doesn't underflow to 0.
    x = (0.05 * jax.random.normal(ks[4], (M, IN_F), jnp.float32)
         + 1j * 0.05 * jax.random.normal(ks[5], (M, IN_F), jnp.float32)
         ).astype(jnp.complex64)

    out = jax.block_until_ready(complex_gabor_layer(x, w, b, OMEGA0, SIGMA0))
    ref = reference(x, w, b, OMEGA0, SIGMA0)
    assert out.shape == (M, OUT_F) and out.dtype == jnp.complex64
    assert jnp.allclose(out, ref, atol=1e-4, rtol=1e-4), "complex path mismatch"

    # Force a multi-step grid (tl=128 -> 2 lane blocks) to exercise padding/grid.
    out_small = jax.block_until_ready(
        complex_gabor_layer(x, w, b, OMEGA0, SIGMA0, tl=128))
    assert jnp.allclose(out_small, ref, atol=1e-4, rtol=1e-4), "tiled path mismatch"

    # ---- real is_first=True fast path ----
    wf = jax.random.uniform(ks[6], (OUT_F, IN_F), jnp.float32, -bound, bound)
    bf = jax.random.uniform(ks[7], (OUT_F,), jnp.float32, -bound, bound)
    xf = 0.05 * jax.random.normal(ks[4], (M, IN_F), jnp.float32)
    out_f = jax.block_until_ready(
        complex_gabor_layer(xf, wf, bf, OMEGA0, SIGMA0, is_first=True))
    ref_f = reference(xf, wf, bf, OMEGA0, SIGMA0)
    assert out_f.shape == (M, OUT_F) and out_f.dtype == jnp.complex64
    assert jnp.allclose(out_f, ref_f, atol=1e-4, rtol=1e-4), "is_first path mismatch"

    print("KERNEL_OK")
</pallas_src>

<mosaic_0001>
module attributes {stable_mosaic.version = 11 : i64} {
  func.func @kernel(%arg0: i32, %arg1: memref<64x256xf32, #tpu.memory_space<vmem>>, %arg2: memref<64x64xf32, #tpu.memory_space<vmem>>, %arg3: memref<64x1xf32, #tpu.memory_space<vmem>>, %arg4: memref<64x256xf32, #tpu.memory_space<vmem>>) attributes {dimension_semantics = [#tpu.dimension_semantics<parallel>], iteration_bounds = array<i64: 1>, scalar_prefetch = 0 : i64, scratch_operands = 0 : i64, tpu.core_type = #tpu.core_type<tc>, window_params = [{transform_indices = @transform_0, window_bounds = array<i64: 64, 256>}, {pipeline_mode = #tpu.pipeline_mode<synchronous>, transform_indices = @transform_1, window_bounds = array<i64: 64, 64>}, {pipeline_mode = #tpu.pipeline_mode<synchronous>, transform_indices = @transform_2, window_bounds = array<i64: 64, 1>}, {transform_indices = @transform_3, window_bounds = array<i64: 64, 256>}]} {
    %c0 = arith.constant 0 : index
    %c0_0 = arith.constant 0 : index
    %0 = vector.load %arg2[%c0, %c0_0] : memref<64x64xf32, #tpu.memory_space<vmem>>, vector<64x64xf32>
    %c0_1 = arith.constant 0 : index
    %c0_2 = arith.constant 0 : index
    %1 = vector.load %arg1[%c0_1, %c0_2] : memref<64x256xf32, #tpu.memory_space<vmem>>, vector<64x256xf32>
    %cst = arith.constant dense<0.000000e+00> : vector<64x256xf32>
    %2 = tpu.matmul %0, %1, %cst {dimension_numbers = #tpu.dot_dimension_numbers<[1], [0], [0], [1], [0, 0, 1, 1], [], []>} : vector<64x64xf32>, vector<64x256xf32>, vector<64x256xf32> -> vector<64x256xf32>
    %c0_3 = arith.constant 0 : index
    %c0_4 = arith.constant 0 : index
    %3 = vector.load %arg3[%c0_3, %c0_4] : memref<64x1xf32, #tpu.memory_space<vmem>>, vector<64x1xf32>
    %4 = vector.broadcast %3 : vector<64x1xf32> to vector<64x256xf32>
    %5 = arith.addf %2, %4 : vector<64x256xf32>
    %6 = vector.extract_strided_slice %5 {offsets = [0, 0], sizes = [32, 256], strides = [1, 1]} : vector<64x256xf32> to vector<32x256xf32>
    %7 = vector.extract_strided_slice %5 {offsets = [32, 0], sizes = [32, 256], strides = [1, 1]} : vector<64x256xf32> to vector<32x256xf32>
    %cst_5 = arith.constant -1.000000e+01 : f32
    %8 = vector.broadcast %cst_5 : f32 to vector<32x256xf32>
    %9 = arith.mulf %8, %7 : vector<32x256xf32>
    %10 = arith.mulf %6, %6 : vector<32x256xf32>
    %11 = arith.mulf %7, %7 : vector<32x256xf32>
    %12 = arith.addf %10, %11 : vector<32x256xf32>
    %cst_6 = arith.constant 1.600000e+03 : f32
    %13 = vector.broadcast %cst_6 : f32 to vector<32x256xf32>
    %14 = arith.mulf %13, %12 : vector<32x256xf32>
    %15 = arith.subf %9, %14 : vector<32x256xf32>
    %16 = math.exp %15 : vector<32x256xf32>
    %cst_7 = arith.constant 1.000000e+01 : f32
    %17 = vector.broadcast %cst_7 : f32 to vector<32x256xf32>
    %18 = arith.mulf %17, %6 : vector<32x256xf32>
    %19 = math.cos %18 : vector<32x256xf32>
    %20 = arith.mulf %16, %19 : vector<32x256xf32>
    %c0_8 = arith.constant 0 : index
    %c0_9 = arith.constant 0 : index
    %21 = vector.load %arg4[%c0_8, %c0_9] : memref<64x256xf32, #tpu.memory_space<vmem>>, vector<32x256xf32>
    tpu.vector_store %arg4[%c0_8, %c0_9], %20 {strides = array<i32>} : memref<64x256xf32, #tpu.memory_space<vmem>>, vector<32x256xf32>,
    %22 = math.sin %18 : vector<32x256xf32>
    %23 = arith.mulf %16, %22 : vector<32x256xf32>
    %c32 = arith.constant 32 : index
    %c0_10 = arith.constant 0 : index
    %24 = vector.load %arg4[%c32, %c0_10] : memref<64x256xf32, #tpu.memory_space<vmem>>, vector<32x256xf32>
    tpu.vector_store %arg4[%c32, %c0_10], %23 {strides = array<i32>} : memref<64x256xf32, #tpu.memory_space<vmem>>, vector<32x256xf32>,
    return
  }
  func.func @transform_0(%arg0: i32) -> (i32, i32) {
    %c0_i32 = arith.constant 0 : i32
    %c0_i32_0 = arith.constant 0 : i32
    return %c0_i32, %arg0 : i32, i32
  }
  func.func @transform_1(%arg0: i32) -> (i32, i32) {
    %c0_i32 = arith.constant 0 : i32
    %c0_i32_0 = arith.constant 0 : i32
    %c0_i32_1 = arith.constant 0 : i32
    return %c0_i32, %c0_i32_0 : i32, i32
  }
  func.func @transform_2(%arg0: i32) -> (i32, i32) {
    %c0_i32 = arith.constant 0 : i32
    %c0_i32_0 = arith.constant 0 : i32
    %c0_i32_1 = arith.constant 0 : i32
    return %c0_i32, %c0_i32_0 : i32, i32
  }
  func.func @transform_3(%arg0: i32) -> (i32, i32) {
    %c0_i32 = arith.constant 0 : i32
    %c0_i32_0 = arith.constant 0 : i32
    return %c0_i32, %arg0 : i32, i32
  }
}

</mosaic_0001>

<llo_original>
// kernel: tpu_custom_call.1
$region0: #{tpu_custom_call.1}
  #allocation0 [shape = 'u32[]', space=smem, size = 0x4, offset = 0x4, fixed_abs, tag = 'smem constant byte address 0x4 - core index']
  #allocation1 [shape = 'u32[144,128]{1,0:T(1,128)}', space=vmem, size = 0x12000, scoped, tag = 'internal scratch']
  %s0 = inlined_call_operand.hbm [shape: f32[64,256], index: 0, kind: input, shape index: {}]
  %s1 = inlined_call_operand.vmem [shape: f32[64,64], index: 1, kind: input, shape index: {}]
  %s2 = inlined_call_operand.vmem [shape: f32[64,1], index: 2, kind: input, shape index: {}]
  %s3 = inlined_call_operand.hbm [shape: f32[64,256], index: 3, kind: output, shape index: {}]
  %s4 = sld [smem:[#allocation0]]
  $region26: #{tpu_custom_call.1} parent=0
    _
  %s6 = ssub.s32 1, %s4
  %s7 = scalar_select 0, %s6, %s4
  $region1: #{tpu_custom_call.1} parent=0
    #allocation2 [shape = 'u8[65536]{0}', space=vmem, size = 0x10000, scoped, tag = 'input window, operand 0, single buffered']
    #allocation3 [shape = 's32[1]{0}', space=sflag, size = 0x4, scoped, tag = 'scoped memory for tpu_custom_call.1']
    #allocation4 [shape = 's32[1]{0}', space=sflag, size = 0x4, scoped, tag = 'scoped memory for tpu_custom_call.1']
    #allocation5 [shape = 'u8[65536]{0}', space=vmem, size = 0x10000, scoped, tag = 'output window, operand 0, single buffered']
    %8 = vsyncpa [#allocation3], 0
    %9 = vsyncpa [#allocation4], 0
    // Predicated region
    $region2: #{tpu_custom_call.1} parent=1 // pred_check
      _
    $region3: #{tpu_custom_call.1} parent=1 // pred_check_branch
      %11 = sbr.rel (0) target = $region5
    $region4: #{tpu_custom_call.1} parent=1 // pred_region
      %s13 = ssub.s32 2048, 2048
      %14 = vsyncadd [#allocation3], %s13
      %s15 = sshll.u32 [#allocation2], 4
      %s16 = int_to_ptr.vmem [resolvable:$true] %s15
      %21 = dma.hbm_to_vmem [thread:$0]  %s0, 2048, %s16, [#allocation3], 256, 256, 16
    $region5: #{tpu_custom_call.1} parent=1 // pred_fallthru
      _
    // Predicated region
    $region6: #{tpu_custom_call.1} parent=1 // pred_check
      _
    $region7: #{tpu_custom_call.1} parent=1 // pred_check_branch
      %23 = sbr.rel (0) target = $region9
    $region8: #{tpu_custom_call.1} parent=1 // pred_region
      _
    $region9: #{tpu_custom_call.1} parent=1 // pred_fallthru
      _
    // Predicated region
    $region10: #{tpu_custom_call.1} parent=1 // pred_check
      _
    $region11: #{tpu_custom_call.1} parent=1 // pred_check_branch
      %25 = sbr.rel (0) target = $region13
    $region12: #{tpu_custom_call.1} parent=1 // pred_region
      _
    $region13: #{tpu_custom_call.1} parent=1 // pred_fallthru
      _
    // Predicated region
    $region14: #{tpu_custom_call.1} parent=1 // pred_check
      _
    $region15: #{tpu_custom_call.1} parent=1 // pred_check_branch
      %27 = sbr.rel (0) target = $region17
    $region16: #{tpu_custom_call.1} parent=1 // pred_region
      %28 = dma.done [#allocation3], 2048
    $region17: #{tpu_custom_call.1} parent=1 // pred_fallthru
      _
    %v29 = vld [vmem:[%s1] sm:$0xff]
    %v30 = vld [vmem:[%s1 + $0x8] sm:$0xff]
    %v31 = vld [vmem:[%s1 + $0x10] sm:$0xff]
    %v32 = vld [vmem:[%s1 + $0x18] sm:$0xff]
    %v33 = vld [vmem:[%s1 + $0x20] sm:$0xff]
    %v34 = vld [vmem:[%s1 + $0x28] sm:$0xff]
    %v35 = vld [vmem:[%s1 + $0x30] sm:$0xff]
    %v36 = vld [vmem:[%s1 + $0x38] sm:$0xff]
    %v37 = vld [vmem:[#allocation2] sm:$0xff]
    %v38 = vld [vmem:[#allocation2 + $0x8] sm:$0xff]
    %v39 = vld [vmem:[#allocation2 + $0x10] sm:$0xff]
    %v40 = vld [vmem:[#allocation2 + $0x18] sm:$0xff]
    %v41 = vld [vmem:[#allocation2 + $0x20] sm:$0xff]
    %v42 = vld [vmem:[#allocation2 + $0x28] sm:$0xff]
    %v43 = vld [vmem:[#allocation2 + $0x30] sm:$0xff]
    %v44 = vld [vmem:[#allocation2 + $0x38] sm:$0xff]
    %v45 = vld [vmem:[#allocation2 + $0x40] sm:$0xff]
    %v46 = vld [vmem:[#allocation2 + $0x48] sm:$0xff]
    %v47 = vld [vmem:[#allocation2 + $0x50] sm:$0xff]
    %v48 = vld [vmem:[#allocation2 + $0x58] sm:$0xff]
    %v49 = vld [vmem:[#allocation2 + $0x60] sm:$0xff]
    %v50 = vld [vmem:[#allocation2 + $0x68] sm:$0xff]
    %v51 = vld [vmem:[#allocation2 + $0x70] sm:$0xff]
    %v52 = vld [vmem:[#allocation2 + $0x78] sm:$0xff]
    %v53 = vld [vmem:[%s2] sm:$0xff]
    %v54 = vld [vmem:[%s2 + $0x8] sm:$0xff]
    %v55 = vld [vmem:[%s2 + $0x10] sm:$0xff]
    %v56 = vld [vmem:[%s2 + $0x18] sm:$0xff]
    %v57 = vld [vmem:[%s2 + $0x20] sm:$0xff]
    %v58 = vld [vmem:[%s2 + $0x28] sm:$0xff]
    %v59 = vld [vmem:[%s2 + $0x30] sm:$0xff]
    %v60 = vld [vmem:[%s2 + $0x38] sm:$0xff]
    %62 = vset.pattern.permute.xlu0 0
    %63 = vperm.xlu0 %62, %v53
    %v64 = vpop.permute.xlu0 %63
    %67 = vset.pattern.permute.xlu0 0
    %68 = vperm.xlu0 %67, %v54
    %v69 = vpop.permute.xlu0 %68
    %72 = vset.pattern.permute.xlu0 0
    %73 = vperm.xlu0 %72, %v55
    %v74 = vpop.permute.xlu0 %73
    %77 = vset.pattern.permute.xlu0 0
    %78 = vperm.xlu0 %77, %v56
    %v79 = vpop.permute.xlu0 %78
    %82 = vset.pattern.permute.xlu0 0
    %83 = vperm.xlu0 %82, %v57
    %v84 = vpop.permute.xlu0 %83
    %87 = vset.pattern.permute.xlu0 0
    %88 = vperm.xlu0 %87, %v58
    %v89 = vpop.permute.xlu0 %88
    %92 = vset.pattern.permute.xlu0 0
    %93 = vperm.xlu0 %92, %v59
    %v94 = vpop.permute.xlu0 %93
    %97 = vset.pattern.permute.xlu0 0
    %98 = vperm.xlu0 %97, %v60
    %v99 = vpop.permute.xlu0 %98
    %vm101 = vcmask 523264
    %v103 = vsel %vm101, %v29, 0
    %v106 = vsel %vm101, %v30, 0
    %v109 = vsel %vm101, %v31, 0
    %v112 = vsel %vm101, %v32, 0
    %v115 = vsel %vm101, %v33, 0
    %v118 = vsel %vm101, %v34, 0
    %v121 = vsel %vm101, %v35, 0
    %v124 = vsel %vm101, %v36, 0
    %126 = vmatprep.subr.mxu0 %v38
    %127 = vmatpush1.msra.mxu0 %v37
    %128 = vmatprep.subr.mxu0 %v40
    %129 = vmatpush1.msra.mxu0 %v39
    %130 = vmatprep.subr.mxu0 %v42
    %131 = vmatpush1.msra.mxu0 %v41
    %132 = vmatprep.subr.mxu0 %v44
    %133 = vmatpush1.msra.mxu0 %v43
    %134 = vmatprep.subr.mxu0 %v46
    %135 = vmatpush1.msra.mxu0 %v45
    %136 = vmatprep.subr.mxu0 %v48
    %137 = vmatpush1.msra.mxu0 %v47
    %138 = vmatprep.subr.mxu0 %v50
    %139 = vmatpush1.msra.mxu0 %v49
    %140 = vmatprep.subr.mxu0 %v52
    %141 = vmatpush1.msra.mxu0 %v51
    %142 = vmatprep.subr.mxu0 0.0
    %143 = vmatpush1.msra.mxu0 0.0
    %144 = vmatprep.subr.mxu0 0.0
    %145 = vmatpush1.msra.mxu0 0.0
    %146 = vmatprep.subr.mxu0 0.0
    %147 = vmatpush1.msra.mxu0 0.0
    %148 = vmatprep.subr.mxu0 0.0
    %149 = vmatpush1.msra.mxu0 0.0
    %150 = vmatprep.subr.mxu0 0.0
    %151 = vmatpush1.msra.mxu0 0.0
    %152 = vmatprep.subr.mxu0 0.0
    %153 = vmatpush1.msra.mxu0 0.0
    %154 = vmatprep.subr.mxu0 0.0
    %155 = vmatpush1.msra.mxu0 0.0
    %156 = vmatprep.subr.mxu0 0.0
    %157 = vmatpush1.msra.mxu0 0.0
    %158 = vmatprep.subr.mxu0 0.0
    %159 = vmatpush1.msra.mxu0 0.0
    %160 = vmatprep.subr.mxu0 0.0
    %161 = vmatpush1.msra.mxu0 0.0
    %162 = vmatprep.subr.mxu0 0.0
    %163 = vmatpush1.msra.mxu0 0.0
    %164 = vmatprep.subr.mxu0 0.0
    %165 = vmatpush1.msra.mxu0 0.0
    %166 = vmatprep.subr.mxu0 0.0
    %167 = vmatpush1.msra.mxu0 0.0
    %168 = vmatprep.subr.mxu0 0.0
    %169 = vmatpush1.msra.mxu0 0.0
    %170 = vmatprep.subr.mxu0 0.0
    %171 = vmatpush1.msra.mxu0 0.0
    %172 = vmatprep.subr.mxu0 0.0
    %173 = vmatpush1.msra.mxu0 0.0
    %174 = vmatprep.subr.mxu0 0.0
    %175 = vmatpush1.msra.mxu0 0.0
    %176 = vmatprep.subr.mxu0 0.0
    %177 = vmatpush1.msra.mxu0 0.0
    %178 = vmatprep.subr.mxu0 0.0
    %179 = vmatpush1.msra.mxu0 0.0
    %180 = vmatprep.subr.mxu0 0.0
    %181 = vmatpush1.msra.mxu0 0.0
    %182 = vmatprep.subr.mxu0 0.0
    %183 = vmatpush1.msra.mxu0 0.0
    %184 = vmatprep.subr.mxu0 0.0
    %185 = vmatpush1.msra.mxu0 0.0
    %186 = vmatprep.subr.mxu0 0.0
    %187 = vmatpush1.msra.mxu0 0.0
    %188 = vmatprep.subr.mxu0 0.0
    %189 = vmatpush1.msra.mxu0 0.0
    %190 = vmatprep.mubr.f32.mxu0 0.0
    %191 = vmatmul.mubr.f32.gmra.mrb[0].mxu0 %v103
    %v192 = vpop.f32.mrb[0].mxu0
    %v193 = vadd.f32 %v64, %v192
    %v194 = vpop.f32.mrb[0].mxu0
    %v195 = vadd.f32 %v64, %v194
    %196 = vmatprep.mubr.f32.mxu0 0.0
    %197 = vmatmul.mubr.f32.gmra.mrb[0].mxu0 %v106
    %v198 = vpop.f32.mrb[0].mxu0
    %v199 = vadd.f32 %v69, %v198
    %v200 = vpop.f32.mrb[0].mxu0
    %v201 = vadd.f32 %v69, %v200
    %202 = vmatprep.mubr.f32.mxu0 0.0
    %203 = vmatmul.mubr.f32.gmra.mrb[0].mxu0 %v109
    %v204 = vpop.f32.mrb[0].mxu0
    %v205 = vadd.f32 %v74, %v204
    %v206 = vpop.f32.mrb[0].mxu0
    %v207 = vadd.f32 %v74, %v206
    %208 = vmatprep.mubr.f32.mxu0 0.0
    %209 = vmatmul.mubr.f32.gmra.mrb[0].mxu0 %v112
    %v210 = vpop.f32.mrb[0].mxu0
    %v211 = vadd.f32 %v79, %v210
    %v212 = vpop.f32.mrb[0].mxu0
    %v213 = vadd.f32 %v79, %v212
    %214 = vmatprep.mubr.f32.mxu0 0.0
    %215 = vmatmul.mubr.f32.gmra.mrb[0].mxu0 %v115
    %v216 = vpop.f32.mrb[0].mxu0
    %v217 = vadd.f32 %v84, %v216
    %v218 = vpop.f32.mrb[0].mxu0
    %v219 = vadd.f32 %v84, %v218
    %220 = vmatprep.mubr.f32.mxu0 0.0
    %221 = vmatmul.mubr.f32.gmra.mrb[0].mxu0 %v118
    %v222 = vpop.f32.mrb[0].mxu0
    %v223 = vadd.f32 %v89, %v222
    %v224 = vpop.f32.mrb[0].mxu0
    %v225 = vadd.f32 %v89, %v224
    %226 = vmatprep.mubr.f32.mxu0 0.0
    %227 = vmatmul.mubr.f32.gmra.mrb[0].mxu0 %v121
    %v228 = vpop.f32.mrb[0].mxu0
    %v229 = vadd.f32 %v94, %v228
    %v230 = vpop.f32.mrb[0].mxu0
    %v231 = vadd.f32 %v94, %v230
    %232 = vmatprep.mubr.f32.mxu0 0.0
    %233 = vmatmul.mubr.f32.gmra.mrb[0].mxu0 %v124
    %v234 = vpop.f32.mrb[0].mxu0
    %v235 = vadd.f32 %v99, %v234
    %v236 = vpop.f32.mrb[0].mxu0
    %v237 = vadd.f32 %v99, %v236
    %238 = vdwg.mxu0
    %v239 = vmul.f32 %v217, -10.0
    %v240 = vmul.f32 %v219, -10.0
    %v241 = vmul.f32 %v223, -10.0
    %v242 = vmul.f32 %v225, -10.0
    %v243 = vmul.f32 %v229, -10.0
    %v244 = vmul.f32 %v231, -10.0
    %v245 = vmul.f32 %v235, -10.0
    %v246 = vmul.f32 %v237, -10.0
    %v247 = vmul.f32 %v193, %v193
    %v248 = vmul.f32 %v195, %v195
    %v249 = vmul.f32 %v199, %v199
    %v250 = vmul.f32 %v201, %v201
    %v251 = vmul.f32 %v205, %v205
    %v252 = vmul.f32 %v207, %v207
    %v253 = vmul.f32 %v211, %v211
    %v254 = vmul.f32 %v213, %v213
    %v255 = vmul.f32 %v217, %v217
    %v256 = vmul.f32 %v219, %v219
    %v257 = vmul.f32 %v223, %v223
    %v258 = vmul.f32 %v225, %v225
    %v259 = vmul.f32 %v229, %v229
    %v260 = vmul.f32 %v231, %v231
    %v261 = vmul.f32 %v235, %v235
    %v262 = vmul.f32 %v237, %v237
    %v263 = vadd.f32 %v247, %v255
    %v264 = vadd.f32 %v248, %v256
    %v265 = vadd.f32 %v249, %v257
    %v266 = vadd.f32 %v250, %v258
    %v267 = vadd.f32 %v251, %v259
    %v268 = vadd.f32 %v252, %v260
    %v269 = vadd.f32 %v253, %v261
    %v270 = vadd.f32 %v254, %v262
    %v271 = vmul.f32 %v263, 1600.0
    %v272 = vmul.f32 %v264, 1600.0
    %v273 = vmul.f32 %v265, 1600.0
    %v274 = vmul.f32 %v266, 1600.0
    %v275 = vmul.f32 %v267, 1600.0
    %v276 = vmul.f32 %v268, 1600.0
    %v277 = vmul.f32 %v269, 1600.0
    %v278 = vmul.f32 %v270, 1600.0
    %v279 = vsub.f32 %v239, %v271
    %v280 = vsub.f32 %v240, %v272
    %v281 = vsub.f32 %v241, %v273
    %v282 = vsub.f32 %v242, %v274
    %v283 = vsub.f32 %v243, %v275
    %v284 = vsub.f32 %v244, %v276
    %v285 = vsub.f32 %v245, %v277
    %v286 = vsub.f32 %v246, %v278
    %v287 = vmul.f32 %v279, 1.442695
    %v288 = vpow.pop %v287
    %v289 = vmul.f32 %v280, 1.442695
    %v290 = vpow.pop %v289
    %v291 = vmul.f32 %v281, 1.442695
    %v292 = vpow.pop %v291
    %v293 = vmul.f32 %v282, 1.442695
    %v294 = vpow.pop %v293
    %v295 = vmul.f32 %v283, 1.442695
    %v296 = vpow.pop %v295
    %v297 = vmul.f32 %v284, 1.442695
    %v298 = vpow.pop %v297
    %v299 = vmul.f32 %v285, 1.442695
    %v300 = vpow.pop %v299
    %v301 = vmul.f32 %v286, 1.442695
    %v302 = vpow.pop %v301
    %v303 = vmul.f32 %v193, 10.0
    %v304 = vmul.f32 %v195, 10.0
    %v305 = vmul.f32 %v199, 10.0
    %v306 = vmul.f32 %v201, 10.0
    %v307 = vmul.f32 %v205, 10.0
    %v308 = vmul.f32 %v207, 10.0
    %v309 = vmul.f32 %v211, 10.0
    %v310 = vmul.f32 %v213, 10.0
    %v311 = vand.u32 2147483647, %v303
    %vm312 = vcmp.le.f32.partialorder %v311, 0.7853982
    %vm313 = vcmp.lt.s32.totalorder %v303, 0
    %v314 = vand.u32 %v303, 2139095040
    %v315 = vshrl.u32 %v314, 23
    %v316 = vsub.s32 %v315, 127
    %v317 = vand.u32 2147483647, %v303
    %v318 = vand.u32 %v317, 8388607
    %v319 = vor.u32 %v318, 8388608
    %v320 = vsub.s32 0, %v319
    %v321 = vadd.s32 %v316, 1
    %vm322 = vcmp.gt.s32.totalorder %v321, 0
    %v323 = vsel %vm322, %v321, 0
    %v324 = vshrl.u32 %v323, 5
    %v325 = vand.u32 %v323, 31
    %v326 = vsub.s32 32, %v325
    %v327 = vshrl.u32 683565275, %v326
    %v328 = vshll.u32 683565275, %v325
    %v329 = vshrl.u32 2475754826, %v326
    %v330 = vor.u32 %v328, %v329
    %v331 = vshll.u32 2475754826, %v325
    %v332 = vshrl.u32 2131351028, %v326
    %v333 = vor.u32 %v331, %v332
    %v334 = vshll.u32 2131351028, %v325
    %v335 = vshrl.u32 2102212464, %v326
    %v336 = vor.u32 %v334, %v335
    %v337 = vshll.u32 2102212464, %v325
    %v338 = vshrl.u32 920167782, %v326
    %v339 = vor.u32 %v337, %v338
    %v340 = vshll.u32 920167782, %v325
    %v341 = vshrl.u32 1326507024, %v326
    %v342 = vor.u32 %v340, %v341
    %vm343 = vcmp.lt.s32.totalorder %v324, 1
    %vm344 = vcmp.lt.s32.totalorder %v324, 2
    %vm345 = vcmp.lt.s32.totalorder %v324, 3
    %vm346 = vcmp.lt.s32.totalorder %v324, 4
    %v347 = vsel %vm343, %v327, %v330
    %v348 = vsel %vm346, %v336, 2102212464
    %v349 = vsel %vm345, %v333, %v348
    %v350 = vsel %vm344, %v347, %v349
    %v351 = vsel %vm343, %v330, %v333
    %v352 = vsel %vm346, %v339, 920167782
    %v353 = vsel %vm345, %v336, %v352
    %v354 = vsel %vm344, %v351, %v353
    %v355 = vsel %vm343, %v333, %v336
    %v356 = vsel %vm346, %v342, 1326507024
    %v357 = vsel %vm345, %v339, %v356
    %v358 = vsel %vm344, %v355, %v357
    %v359 = vshll.u32 %v319, 8
    %v360 = vmul.u32.u64.compose %v359, %v358
    %v361 = vextract.low.u32 %v360
    %v362 = vextract.high.u32 %v360
    %v363 = vmul.u32.u64.compose %v359, %v354
    %v364 = vextract.low.u32 %v363
    %v365 = vextract.high.u32 %v363
    %v366 = vmul.u32 %v359, %v350
    %v367 = vadd.s32 %v362, %v364
    %vm368 = vc.u32 %v362, %v364
    %v369 = vadd.s32 %v365, 1
    %v370 = vsel %vm368, %v369, %v365
    %v371 = vadd.s32 %v366, %v370
    %v372 = vadd.s32 %v371, 536870912
    %v373 = vshrl.u32 %v372, 30
    %v374 = vshll.u32 %v373, 30
    %v375 = vsub.s32 %v371, %v374
    %vm376 = vcmp.lt.s32.totalorder %v375, 0
    %v377 = vsub.s32 0, %v375
    %v378 = vsel %vm376, %v377, %v375
    %v379 = vclz %v378
    %v380 = vsub.s32 %v379, 2
    %vm381 = vcmp.gt.s32.totalorder 0, %v380
    %v382 = vsel %vm381, 0, %v380
    %v383 = vsub.s32 32, %v382
    %v384 = vshll.u32 %v375, %v382
    %v385 = vshrl.u32 %v367, %v383
    %v386 = vor.u32 %v384, %v385
    %v387 = vsub.s32 4294967266, %v382
    %v388 = vadd.s32 %v387, 127
    %v389 = vshll.u32 %v388, 23
    %v390 = vor.u32 4788187, %v389
    %v391 = vand.u32 2147483647, %v390
    %v393 = vcvt.s32.f32 %v386
    %v394 = vmul.f32 %v393, %v391
    %v395 = vxor.u32 %v394, 2147483648
    %v396 = vsel %vm313, %v395, %v394
    %v397 = vsub.s32 4, %v373
    %v398 = vsel %vm313, %v397, %v373
    %v399 = vsel %vm312, %v303, %v396
    %v400 = vsel %vm312, 0, %v398
    %v401 = vcosq.f32.pop %v399
    %v402 = vsinq.f32.pop %v399
    %vm403 = vweird.f32 %v303
    %v404 = vand.u32 %v400, 3
    %vm405 = vcmp.lt.s32.totalorder %v404, 2
    %vm406 = vcmp.eq.s32.totalorder %v404, 0
    %v407 = vxor.u32 %v402, 2147483648
    %v408 = vsel %vm406, %v401, %v407
    %vm409 = vcmp.eq.s32.totalorder %v404, 2
    %v410 = vxor.u32 %v401, 2147483648
    %v411 = vsel %vm409, %v410, %v402
    %v412 = vsel %vm405, %v408, %v411
    %v413 = vsel %vm403, nan, %v412
    %v414 = vand.u32 2147483647, %v304
    %vm415 = vcmp.le.f32.partialorder %v414, 0.7853982
    %vm416 = vcmp.lt.s32.totalorder %v304, 0
    %v417 = vand.u32 %v304, 2139095040
    %v418 = vshrl.u32 %v417, 23
    %v419 = vsub.s32 %v418, 127
    %v420 = vand.u32 2147483647, %v304
    %v421 = vand.u32 %v420, 8388607
    %v422 = vor.u32 %v421, 8388608
    %v423 = vsub.s32 0, %v422
    %v424 = vadd.s32 %v419, 1
    %vm425 = vcmp.gt.s32.totalorder %v424, 0
    %v426 = vsel %vm425, %v424, 0
    %v427 = vshrl.u32 %v426, 5
    %v428 = vand.u32 %v426, 31
    %v429 = vsub.s32 32, %v428
    %v430 = vshrl.u32 683565275, %v429
    %v431 = vshll.u32 683565275, %v428
    %v432 = vshrl.u32 2475754826, %v429
    %v433 = vor.u32 %v431, %v432
    %v434 = vshll.u32 2475754826, %v428
    %v435 = vshrl.u32 2131351028, %v429
    %v436 = vor.u32 %v434, %v435
    %v437 = vshll.u32 2131351028, %v428
    %v438 = vshrl.u32 2102212464, %v429
    %v439 = vor.u32 %v437, %v438
    %v440 = vshll.u32 2102212464, %v428
    %v441 = vshrl.u32 920167782, %v429
    %v442 = vor.u32 %v440, %v441
    %v443 = vshll.u32 920167782, %v428
    %v444 = vshrl.u32 1326507024, %v429
    %v445 = vor.u32 %v443, %v444
    %vm446 = vcmp.lt.s32.totalorder %v427, 1
    %vm447 = vcmp.lt.s32.totalorder %v427, 2
    %vm448 = vcmp.lt.s32.totalorder %v427, 3
    %vm449 = vcmp.lt.s32.totalorder %v427, 4
    %v450 = vsel %vm446, %v430, %v433
    %v451 = vsel %vm449, %v439, 2102212464
    %v452 = vsel %vm448, %v436, %v451
    %v453 = vsel %vm447, %v450, %v452
    %v454 = vsel %vm446, %v433, %v436
    %v455 = vsel %vm449, %v442, 920167782
    %v456 = vsel %vm448, %v439, %v455
    %v457 = vsel %vm447, %v454, %v456
    %v458 = vsel %vm446, %v436, %v439
    %v459 = vsel %vm449, %v445, 1326507024
    %v460 = vsel %vm448, %v442, %v459
    %v461 = vsel %vm447, %v458, %v460
    %v462 = vshll.u32 %v422, 8
    %v463 = vmul.u32.u64.compose %v462, %v461
    %v464 = vextract.low.u32 %v463
    %v465 = vextract.high.u32 %v463
    %v466 = vmul.u32.u64.compose %v462, %v457
    %v467 = vextract.low.u32 %v466
    %v468 = vextract.high.u32 %v466
    %v469 = vmul.u32 %v462, %v453
    %v470 = vadd.s32 %v465, %v467
    %vm471 = vc.u32 %v465, %v467
    %v472 = vadd.s32 %v468, 1
    %v473 = vsel %vm471, %v472, %v468
    %v474 = vadd.s32 %v469, %v473
    %v475 = vadd.s32 %v474, 536870912
    %v476 = vshrl.u32 %v475, 30
    %v477 = vshll.u32 %v476, 30
    %v478 = vsub.s32 %v474, %v477
    %vm479 = vcmp.lt.s32.totalorder %v478, 0
    %v480 = vsub.s32 0, %v478
    %v481 = vsel %vm479, %v480, %v478
    %v482 = vclz %v481
    %v483 = vsub.s32 %v482, 2
    %vm484 = vcmp.gt.s32.totalorder 0, %v483
    %v485 = vsel %vm484, 0, %v483
    %v486 = vsub.s32 32, %v485
    %v487 = vshll.u32 %v478, %v485
    %v488 = vshrl.u32 %v470, %v486
    %v489 = vor.u32 %v487, %v488
    %v490 = vsub.s32 4294967266, %v485
    %v491 = vadd.s32 %v490, 127
    %v492 = vshll.u32 %v491, 23
    %v493 = vor.u32 4788187, %v492
    %v494 = vand.u32 2147483647, %v493
    %v496 = vcvt.s32.f32 %v489
    %v497 = vmul.f32 %v496, %v494
    %v498 = vxor.u32 %v497, 2147483648
    %v499 = vsel %vm416, %v498, %v497
    %v500 = vsub.s32 4, %v476
    %v501 = vsel %vm416, %v500, %v476
    %v502 = vsel %vm415, %v304, %v499
    %v503 = vsel %vm415, 0, %v501
    %v504 = vcosq.f32.pop %v502
    %v505 = vsinq.f32.pop %v502
    %vm506 = vweird.f32 %v304
    %v507 = vand.u32 %v503, 3
    %vm508 = vcmp.lt.s32.totalorder %v507, 2
    %vm509 = vcmp.eq.s32.totalorder %v507, 0
    %v510 = vxor.u32 %v505, 2147483648
    %v511 = vsel %vm509, %v504, %v510
    %vm512 = vcmp.eq.s32.totalorder %v507, 2
    %v513 = vxor.u32 %v504, 2147483648
    %v514 = vsel %vm512, %v513, %v505
    %v515 = vsel %vm508, %v511, %v514
    %v516 = vsel %vm506, nan, %v515
    %v517 = vand.u32 2147483647, %v305
    %vm518 = vcmp.le.f32.partialorder %v517, 0.7853982
    %vm519 = vcmp.lt.s32.totalorder %v305, 0
    %v520 = vand.u32 %v305, 2139095040
    %v521 = vshrl.u32 %v520, 23
    %v522 = vsub.s32 %v521, 127
    %v523 = vand.u32 2147483647, %v305
    %v524 = vand.u32 %v523, 8388607
    %v525 = vor.u32 %v524, 8388608
    %v526 = vsub.s32 0, %v525
    %v527 = vadd.s32 %v522, 1
    %vm528 = vcmp.gt.s32.totalorder %v527, 0
    %v529 = vsel %vm528, %v527, 0
    %v530 = vshrl.u32 %v529, 5
    %v531 = vand.u32 %v529, 31
    %v532 = vsub.s32 32, %v531
    %v533 = vshrl.u32 683565275, %v532
    %v534 = vshll.u32 683565275, %v531
    %v535 = vshrl.u32 2475754826, %v532
    %v536 = vor.u32 %v534, %v535
    %v537 = vshll.u32 2475754826, %v531
    %v538 = vshrl.u32 2131351028, %v532
    %v539 = vor.u32 %v537, %v538
    %v540 = vshll.u32 2131351028, %v531
    %v541 = vshrl.u32 2102212464, %v532
    %v542 = vor.u32 %v540, %v541
    %v543 = vshll.u32 2102212464, %v531
    %v544 = vshrl.u32 920167782, %v532
    %v545 = vor.u32 %v543, %v544
    %v546 = vshll.u32 920167782, %v531
    %v547 = vshrl.u32 1326507024, %v532
    %v548 = vor.u32 %v546, %v547
    %vm549 = vcmp.lt.s32.totalorder %v530, 1
    %vm550 = vcmp.lt.s32.totalorder %v530, 2
    %vm551 = vcmp.lt.s32.totalorder %v530, 3
    %vm552 = vcmp.lt.s32.totalorder %v530, 4
    %v553 = vsel %vm549, %v533, %v536
    %v554 = vsel %vm552, %v542, 2102212464
    %v555 = vsel %vm551, %v539, %v554
    %v556 = vsel %vm550, %v553, %v555
    %v557 = vsel %vm549, %v536, %v539
    %v558 = vsel %vm552, %v545, 920167782
    %v559 = vsel %vm551, %v542, %v558
    %v560 = vsel %vm550, %v557, %v559
    %v561 = vsel %vm549, %v539, %v542
    %v562 = vsel %vm552, %v548, 1326507024
    %v563 = vsel %vm551, %v545, %v562
    %v564 = vsel %vm550, %v561, %v563
    %v565 = vshll.u32 %v525, 8
    %v566 = vmul.u32.u64.compose %v565, %v564
    %v567 = vextract.low.u32 %v566
    %v568 = vextract.high.u32 %v566
    %v569 = vmul.u32.u64.compose %v565, %v560
    %v570 = vextract.low.u32 %v569
    %v571 = vextract.high.u32 %v569
    %v572 = vmul.u32 %v565, %v556
    %v573 = vadd.s32 %v568, %v570
    %vm574 = vc.u32 %v568, %v570
    %v575 = vadd.s32 %v571, 1
    %v576 = vsel %vm574, %v575, %v571
    %v577 = vadd.s32 %v572, %v576
    %v578 = vadd.s32 %v577, 536870912
    %v579 = vshrl.u32 %v578, 30
    %v580 = vshll.u32 %v579, 30
    %v581 = vsub.s32 %v577, %v580
    %vm582 = vcmp.lt.s32.totalorder %v581, 0
    %v583 = vsub.s32 0, %v581
    %v584 = vsel %vm582, %v583, %v581
    %v585 = vclz %v584
    %v586 = vsub.s32 %v585, 2
    %vm587 = vcmp.gt.s32.totalorder 0, %v586
    %v588 = vsel %vm587, 0, %v586
    %v589 = vsub.s32 32, %v588
    %v590 = vshll.u32 %v581, %v588
    %v591 = vshrl.u32 %v573, %v589
    %v592 = vor.u32 %v590, %v591
    %v593 = vsub.s32 4294967266, %v588
    %v594 = vadd.s32 %v593, 127
    %v595 = vshll.u32 %v594, 23
    %v596 = vor.u32 4788187, %v595
    %v597 = vand.u32 2147483647, %v596
    %v599 = vcvt.s32.f32 %v592
    %v600 = vmul.f32 %v599, %v597
    %v601 = vxor.u32 %v600, 2147483648
    %v602 = vsel %vm519, %v601, %v600
    %v603 = vsub.s32 4, %v579
    %v604 = vsel %vm519, %v603, %v579
    %v605 = vsel %vm518, %v305, %v602
    %v606 = vsel %vm518, 0, %v604
    %v607 = vcosq.f32.pop %v605
    %v608 = vsinq.f32.pop %v605
    %vm609 = vweird.f32 %v305
    %v610 = vand.u32 %v606, 3
    %vm611 = vcmp.lt.s32.totalorder %v610, 2
    %vm612 = vcmp.eq.s32.totalorder %v610, 0
    %v613 = vxor.u32 %v608, 2147483648
    %v614 = vsel %vm612, %v607, %v613
    %vm615 = vcmp.eq.s32.totalorder %v610, 2
    %v616 = vxor.u32 %v607, 2147483648
    %v617 = vsel %vm615, %v616, %v608
    %v618 = vsel %vm611, %v614, %v617
    %v619 = vsel %vm609, nan, %v618
    %v620 = vand.u32 2147483647, %v306
    %vm621 = vcmp.le.f32.partialorder %v620, 0.7853982
    %vm622 = vcmp.lt.s32.totalorder %v306, 0
    %v623 = vand.u32 %v306, 2139095040
    %v624 = vshrl.u32 %v623, 23
    %v625 = vsub.s32 %v624, 127
    %v626 = vand.u32 2147483647, %v306
    %v627 = vand.u32 %v626, 8388607
    %v628 = vor.u32 %v627, 8388608
    %v629 = vsub.s32 0, %v628
    %v630 = vadd.s32 %v625, 1
    %vm631 = vcmp.gt.s32.totalorder %v630, 0
    %v632 = vsel %vm631, %v630, 0
    %v633 = vshrl.u32 %v632, 5
    %v634 = vand.u32 %v632, 31
    %v635 = vsub.s32 32, %v634
    %v636 = vshrl.u32 683565275, %v635
    %v637 = vshll.u32 683565275, %v634
    %v638 = vshrl.u32 2475754826, %v635
    %v639 = vor.u32 %v637, %v638
    %v640 = vshll.u32 2475754826, %v634
    %v641 = vshrl.u32 2131351028, %v635
    %v642 = vor.u32 %v640, %v641
    %v643 = vshll.u32 2131351028, %v634
    %v644 = vshrl.u32 2102212464, %v635
    %v645 = vor.u32 %v643, %v644
    %v646 = vshll.u32 2102212464, %v634
    %v647 = vshrl.u32 920167782, %v635
    %v648 = vor.u32 %v646, %v647
    %v649 = vshll.u32 920167782, %v634
    %v650 = vshrl.u32 1326507024, %v635
    %v651 = vor.u32 %v649, %v650
    %vm652 = vcmp.lt.s32.totalorder %v633, 1
    %vm653 = vcmp.lt.s32.totalorder %v633, 2
    %vm654 = vcmp.lt.s32.totalorder %v633, 3
    %vm655 = vcmp.lt.s32.totalorder %v633, 4
    %v656 = vsel %vm652, %v636, %v639
    %v657 = vsel %vm655, %v645, 2102212464
    %v658 = vsel %vm654, %v642, %v657
    %v659 = vsel %vm653, %v656, %v658
    %v660 = vsel %vm652, %v639, %v642
    %v661 = vsel %vm655, %v648, 920167782
    %v662 = vsel %vm654, %v645, %v661
    %v663 = vsel %vm653, %v660, %v662
    %v664 = vsel %vm652, %v642, %v645
    %v665 = vsel %vm655, %v651, 1326507024
    %v666 = vsel %vm654, %v648, %v665
    %v667 = vsel %vm653, %v664, %v666
    %v668 = vshll.u32 %v628, 8
    %v669 = vmul.u32.u64.compose %v668, %v667
    %v670 = vextract.low.u32 %v669
    %v671 = vextract.high.u32 %v669
    %v672 = vmul.u32.u64.compose %v668, %v663
    %v673 = vextract.low.u32 %v672
    %v674 = vextract.high.u32 %v672
    %v675 = vmul.u32 %v668, %v659
    %v676 = vadd.s32 %v671, %v673
    %vm677 = vc.u32 %v671, %v673
    %v678 = vadd.s32 %v674, 1
    %v679 = vsel %vm677, %v678, %v674
    %v680 = vadd.s32 %v675, %v679
    %v681 = vadd.s32 %v680, 536870912
    %v682 = vshrl.u32 %v681, 30
    %v683 = vshll.u32 %v682, 30
    %v684 = vsub.s32 %v680, %v683
    %vm685 = vcmp.lt.s32.totalorder %v684, 0
    %v686 = vsub.s32 0, %v684
    %v687 = vsel %vm685, %v686, %v684
    %v688 = vclz %v687
    %v689 = vsub.s32 %v688, 2
    %vm690 = vcmp.gt.s32.totalorder 0, %v689
    %v691 = vsel %vm690, 0, %v689
    %v692 = vsub.s32 32, %v691
    %v693 = vshll.u32 %v684, %v691
    %v694 = vshrl.u32 %v676, %v692
    %v695 = vor.u32 %v693, %v694
    %v696 = vsub.s32 4294967266, %v691
    %v697 = vadd.s32 %v696, 127
    %v698 = vshll.u32 %v697, 23
    %v699 = vor.u32 4788187, %v698
    %v700 = vand.u32 2147483647, %v699
    %v702 = vcvt.s32.f32 %v695
    %v703 = vmul.f32 %v702, %v700
    %v704 = vxor.u32 %v703, 2147483648
    %v705 = vsel %vm622, %v704, %v703
    %v706 = vsub.s32 4, %v682
    %v707 = vsel %vm622, %v706, %v682
    %v708 = vsel %vm621, %v306, %v705
    %v709 = vsel %vm621, 0, %v707
    %v710 = vcosq.f32.pop %v708
    %v711 = vsinq.f32.pop %v708
    %vm712 = vweird.f32 %v306
    %v713 = vand.u32 %v709, 3
    %vm714 = vcmp.lt.s32.totalorder %v713, 2
    %vm715 = vcmp.eq.s32.totalorder %v713, 0
    %v716 = vxor.u32 %v711, 2147483648
    %v717 = vsel %vm715, %v710, %v716
    %vm718 = vcmp.eq.s32.totalorder %v713, 2
    %v719 = vxor.u32 %v710, 2147483648
    %v720 = vsel %vm718, %v719, %v711
    %v721 = vsel %vm714, %v717, %v720
    %v722 = vsel %vm712, nan, %v721
    %v723 = vand.u32 2147483647, %v307
    %vm724 = vcmp.le.f32.partialorder %v723, 0.7853982
    %vm725 = vcmp.lt.s32.totalorder %v307, 0
    %v726 = vand.u32 %v307, 2139095040
    %v727 = vshrl.u32 %v726, 23
    %v728 = vsub.s32 %v727, 127
    %v729 = vand.u32 2147483647, %v307
    %v730 = vand.u32 %v729, 8388607
    %v731 = vor.u32 %v730, 8388608
    %v732 = vsub.s32 0, %v731
    %v733 = vadd.s32 %v728, 1
    %vm734 = vcmp.gt.s32.totalorder %v733, 0
    %v735 = vsel %vm734, %v733, 0
    %v736 = vshrl.u32 %v735, 5
    %v737 = vand.u32 %v735, 31
    %v738 = vsub.s32 32, %v737
    %v739 = vshrl.u32 683565275, %v738
    %v740 = vshll.u32 683565275, %v737
    %v741 = vshrl.u32 2475754826, %v738
    %v742 = vor.u32 %v740, %v741
    %v743 = vshll.u32 2475754826, %v737
    %v744 = vshrl.u32 2131351028, %v738
    %v745 = vor.u32 %v743, %v744
    %v746 = vshll.u32 2131351028, %v737
    %v747 = vshrl.u32 2102212464, %v738
    %v748 = vor.u32 %v746, %v747
    %v749 = vshll.u32 2102212464, %v737
    %v750 = vshrl.u32 920167782, %v738
    %v751 = vor.u32 %v749, %v750
    %v752 = vshll.u32 920167782, %v737
    %v753 = vshrl.u32 1326507024, %v738
    %v754 = vor.u32 %v752, %v753
    %vm755 = vcmp.lt.s32.totalorder %v736, 1
    %vm756 = vcmp.lt.s32.totalorder %v736, 2
    %vm757 = vcmp.lt.s32.totalorder %v736, 3
    %vm758 = vcmp.lt.s32.totalorder %v736, 4
    %v759 = vsel %vm755, %v739, %v742
    %v760 = vsel %vm758, %v748, 2102212464
    %v761 = vsel %vm757, %v745, %v760
    %v762 = vsel %vm756, %v759, %v761
    %v763 = vsel %vm755, %v742, %v745
    %v764 = vsel %vm758, %v751, 920167782
    %v765 = vsel %vm757, %v748, %v764
    %v766 = vsel %vm756, %v763, %v765
    %v767 = vsel %vm755, %v745, %v748
    %v768 = vsel %vm758, %v754, 1326507024
    %v769 = vsel %vm757, %v751, %v768
    %v770 = vsel %vm756, %v767, %v769
    %v771 = vshll.u32 %v731, 8
    %v772 = vmul.u32.u64.compose %v771, %v770
    %v773 = vextract.low.u32 %v772
    %v774 = vextract.high.u32 %v772
    %v775 = vmul.u32.u64.compose %v771, %v766
    %v776 = vextract.low.u32 %v775
    %v777 = vextract.high.u32 %v775
    %v778 = vmul.u32 %v771, %v762
    %v779 = vadd.s32 %v774, %v776
    %vm780 = vc.u32 %v774, %v776
    %v781 = vadd.s32 %v777, 1
    %v782 = vsel %vm780, %v781, %v777
    %v783 = vadd.s32 %v778, %v782
    %v784 = vadd.s32 %v783, 536870912
    %v785 = vshrl.u32 %v784, 30
    %v786 = vshll.u32 %v785, 30
    %v787 = vsub.s32 %v783, %v786
    %vm788 = vcmp.lt.s32.totalorder %v787, 0
    %v789 = vsub.s32 0, %v787
    %v790 = vsel %vm788, %v789, %v787
    %v791 = vclz %v790
    %v792 = vsub.s32 %v791, 2
    %vm793 = vcmp.gt.s32.totalorder 0, %v792
    %v794 = vsel %vm793, 0, %v792
    %v795 = vsub.s32 32, %v794
    %v796 = vshll.u32 %v787, %v794
    %v797 = vshrl.u32 %v779, %v795
    %v798 = vor.u32 %v796, %v797
    %v799 = vsub.s32 4294967266, %v794
    %v800 = vadd.s32 %v799, 127
    %v801 = vshll.u32 %v800, 23
    %v802 = vor.u32 4788187, %v801
    %v803 = vand.u32 2147483647, %v802
    %v805 = vcvt.s32.f32 %v798
    %v806 = vmul.f32 %v805, %v803
    %v807 = vxor.u32 %v806, 2147483648
    %v808 = vsel %vm725, %v807, %v806
    %v809 = vsub.s32 4, %v785
    %v810 = vsel %vm725, %v809, %v785
    %v811 = vsel %vm724, %v307, %v808
    %v812 = vsel %vm724, 0, %v810
    %v813 = vcosq.f32.pop %v811
    %v814 = vsinq.f32.pop %v811
    %vm815 = vweird.f32 %v307
    %v816 = vand.u32 %v812, 3
    %vm817 = vcmp.lt.s32.totalorder %v816, 2
    %vm818 = vcmp.eq.s32.totalorder %v816, 0
    %v819 = vxor.u32 %v814, 2147483648
    %v820 = vsel %vm818, %v813, %v819
    %vm821 = vcmp.eq.s32.totalorder %v816, 2
    %v822 = vxor.u32 %v813, 2147483648
    %v823 = vsel %vm821, %v822, %v814
    %v824 = vsel %vm817, %v820, %v823
    %v825 = vsel %vm815, nan, %v824
    %v826 = vand.u32 2147483647, %v308
    %vm827 = vcmp.le.f32.partialorder %v826, 0.7853982
    %vm828 = vcmp.lt.s32.totalorder %v308, 0
    %v829 = vand.u32 %v308, 2139095040
    %v830 = vshrl.u32 %v829, 23
    %v831 = vsub.s32 %v830, 127
    %v832 = vand.u32 2147483647, %v308
    %v833 = vand.u32 %v832, 8388607
    %v834 = vor.u32 %v833, 8388608
    %v835 = vsub.s32 0, %v834
    %v836 = vadd.s32 %v831, 1
    %vm837 = vcmp.gt.s32.totalorder %v836, 0
    %v838 = vsel %vm837, %v836, 0
    %v839 = vshrl.u32 %v838, 5
    %v840 = vand.u32 %v838, 31
    %v841 = vsub.s32 32, %v840
    %v842 = vshrl.u32 683565275, %v841
    %v843 = vshll.u32 683565275, %v840
    %v844 = vshrl.u32 2475754826, %v841
    %v845 = vor.u32 %v843, %v844
    %v846 = vshll.u32 2475754826, %v840
    %v847 = vshrl.u32 2131351028, %v841
    %v848 = vor.u32 %v846, %v847
    %v849 = vshll.u32 2131351028, %v840
    %v850 = vshrl.u32 2102212464, %v841
    %v851 = vor.u32 %v849, %v850
    %v852 = vshll.u32 2102212464, %v840
    %v853 = vshrl.u32 920167782, %v841
    %v854 = vor.u32 %v852, %v853
    %v855 = vshll.u32 920167782, %v840
    %v856 = vshrl.u32 1326507024, %v841
    %v857 = vor.u32 %v855, %v856
    %vm858 = vcmp.lt.s32.totalorder %v839, 1
    %vm859 = vcmp.lt.s32.totalorder %v839, 2
    %vm860 = vcmp.lt.s32.totalorder %v839, 3
    %vm861 = vcmp.lt.s32.totalorder %v839, 4
    %v862 = vsel %vm858, %v842, %v845
    %v863 = vsel %vm861, %v851, 2102212464
    %v864 = vsel %vm860, %v848, %v863
    %v865 = vsel %vm859, %v862, %v864
    %v866 = vsel %vm858, %v845, %v848
    %v867 = vsel %vm861, %v854, 920167782
    %v868 = vsel %vm860, %v851, %v867
    %v869 = vsel %vm859, %v866, %v868
    %v870 = vsel %vm858, %v848, %v851
    %v871 = vsel %vm861, %v857, 1326507024
    %v872 = vsel %vm860, %v854, %v871
    %v873 = vsel %vm859, %v870, %v872
    %v874 = vshll.u32 %v834, 8
    %v875 = vmul.u32.u64.compose %v874, %v873
    %v876 = vextract.low.u32 %v875
    %v877 = vextract.high.u32 %v875
    %v878 = vmul.u32.u64.compose %v874, %v869
    %v879 = vextract.low.u32 %v878
    %v880 = vextract.high.u32 %v878
    %v881 = vmul.u32 %v874, %v865
    %v882 = vadd.s32 %v877, %v879
    %vm883 = vc.u32 %v877, %v879
    %v884 = vadd.s32 %v880, 1
    %v885 = vsel %vm883, %v884, %v880
    %v886 = vadd.s32 %v881, %v885
    %v887 = vadd.s32 %v886, 536870912
    %v888 = vshrl.u32 %v887, 30
    %v889 = vshll.u32 %v888, 30
    %v890 = vsub.s32 %v886, %v889
    %vm891 = vcmp.lt.s32.totalorder %v890, 0
    %v892 = vsub.s32 0, %v890
    %v893 = vsel %vm891, %v892, %v890
    %v894 = vclz %v893
    %v895 = vsub.s32 %v894, 2
    %vm896 = vcmp.gt.s32.totalorder 0, %v895
    %v897 = vsel %vm896, 0, %v895
    %v898 = vsub.s32 32, %v897
    %v899 = vshll.u32 %v890, %v897
    %v900 = vshrl.u32 %v882, %v898
    %v901 = vor.u32 %v899, %v900
    %v902 = vsub.s32 4294967266, %v897
    %v903 = vadd.s32 %v902, 127
    %v904 = vshll.u32 %v903, 23
    %v905 = vor.u32 4788187, %v904
    %v906 = vand.u32 2147483647, %v905
    %v908 = vcvt.s32.f32 %v901
    %v909 = vmul.f32 %v908, %v906
    %v910 = vxor.u32 %v909, 2147483648
    %v911 = vsel %vm828, %v910, %v909
    %v912 = vsub.s32 4, %v888
    %v913 = vsel %vm828, %v912, %v888
    %v914 = vsel %vm827, %v308, %v911
    %v915 = vsel %vm827, 0, %v913
    %v916 = vcosq.f32.pop %v914
    %v917 = vsinq.f32.pop %v914
    %vm918 = vweird.f32 %v308
    %v919 = vand.u32 %v915, 3
    %vm920 = vcmp.lt.s32.totalorder %v919, 2
    %vm921 = vcmp.eq.s32.totalorder %v919, 0
    %v922 = vxor.u32 %v917, 2147483648
    %v923 = vsel %vm921, %v916, %v922
    %vm924 = vcmp.eq.s32.totalorder %v919, 2
    %v925 = vxor.u32 %v916, 2147483648
    %v926 = vsel %vm924, %v925, %v917
    %v927 = vsel %vm920, %v923, %v926
    %v928 = vsel %vm918, nan, %v927
    %v929 = vand.u32 2147483647, %v309
    %vm930 = vcmp.le.f32.partialorder %v929, 0.7853982
    %vm931 = vcmp.lt.s32.totalorder %v309, 0
    %v932 = vand.u32 %v309, 2139095040
    %v933 = vshrl.u32 %v932, 23
    %v934 = vsub.s32 %v933, 127
    %v935 = vand.u32 2147483647, %v309
    %v936 = vand.u32 %v935, 8388607
    %v937 = vor.u32 %v936, 8388608
    %v938 = vsub.s32 0, %v937
    %v939 = vadd.s32 %v934, 1
    %vm940 = vcmp.gt.s32.totalorder %v939, 0
    %v941 = vsel %vm940, %v939, 0
    %v942 = vshrl.u32 %v941, 5
    %v943 = vand.u32 %v941, 31
    %v944 = vsub.s32 32, %v943
    %v945 = vshrl.u32 683565275, %v944
    %v946 = vshll.u32 683565275, %v943
    %v947 = vshrl.u32 2475754826, %v944
    %v948 = vor.u32 %v946, %v947
    %v949 = vshll.u32 2475754826, %v943
    %v950 = vshrl.u32 2131351028, %v944
    %v951 = vor.u32 %v949, %v950
    %v952 = vshll.u32 2131351028, %v943
    %v953 = vshrl.u32 2102212464, %v944
    %v954 = vor.u32 %v952, %v953
    %v955 = vshll.u32 2102212464, %v943
    %v956 = vshrl.u32 920167782, %v944
    %v957 = vor.u32 %v955, %v956
    %v958 = vshll.u32 920167782, %v943
    %v959 = vshrl.u32 1326507024, %v944
    %v960 = vor.u32 %v958, %v959
    %vm961 = vcmp.lt.s32.totalorder %v942, 1
    %vm962 = vcmp.lt.s32.totalorder %v942, 2
    %vm963 = vcmp.lt.s32.totalorder %v942, 3
    %vm964 = vcmp.lt.s32.totalorder %v942, 4
    %v965 = vsel %vm961, %v945, %v948
    %v966 = vsel %vm964, %v954, 2102212464
    %v967 = vsel %vm963, %v951, %v966
    %v968 = vsel %vm962, %v965, %v967
    %v969 = vsel %vm961, %v948, %v951
    %v970 = vsel %vm964, %v957, 920167782
    %v971 = vsel %vm963, %v954, %v970
    %v972 = vsel %vm962, %v969, %v971
    %v973 = vsel %vm961, %v951, %v954
    %v974 = vsel %vm964, %v960, 1326507024
    %v975 = vsel %vm963, %v957, %v974
    %v976 = vsel %vm962, %v973, %v975
    %v977 = vshll.u32 %v937, 8
    %v978 = vmul.u32.u64.compose %v977, %v976
    %v979 = vextract.low.u32 %v978
    %v980 = vextract.high.u32 %v978
    %v981 = vmul.u32.u64.compose %v977, %v972
    %v982 = vextract.low.u32 %v981
    %v983 = vextract.high.u32 %v981
    %v984 = vmul.u32 %v977, %v968
    %v985 = vadd.s32 %v980, %v982
    %vm986 = vc.u32 %v980, %v982
    %v987 = vadd.s32 %v983, 1
    %v988 = vsel %vm986, %v987, %v983
    %v989 = vadd.s32 %v984, %v988
    %v990 = vadd.s32 %v989, 536870912
    %v991 = vshrl.u32 %v990, 30
    %v992 = vshll.u32 %v991, 30
    %v993 = vsub.s32 %v989, %v992
    %vm994 = vcmp.lt.s32.totalorder %v993, 0
    %v995 = vsub.s32 0, %v993
    %v996 = vsel %vm994, %v995, %v993
    %v997 = vclz %v996
    %v998 = vsub.s32 %v997, 2
    %vm999 = vcmp.gt.s32.totalorder 0, %v998
    %v1000 = vsel %vm999, 0, %v998
    %v1001 = vsub.s32 32, %v1000
    %v1002 = vshll.u32 %v993, %v1000
    %v1003 = vshrl.u32 %v985, %v1001
    %v1004 = vor.u32 %v1002, %v1003
    %v1005 = vsub.s32 4294967266, %v1000
    %v1006 = vadd.s32 %v1005, 127
    %v1007 = vshll.u32 %v1006, 23
    %v1008 = vor.u32 4788187, %v1007
    %v1009 = vand.u32 2147483647, %v1008
    %v1011 = vcvt.s32.f32 %v1004
    %v1012 = vmul.f32 %v1011, %v1009
    %v1013 = vxor.u32 %v1012, 2147483648
    %v1014 = vsel %vm931, %v1013, %v1012
    %v1015 = vsub.s32 4, %v991
    %v1016 = vsel %vm931, %v1015, %v991
    %v1017 = vsel %vm930, %v309, %v1014
    %v1018 = vsel %vm930, 0, %v1016
    %v1019 = vcosq.f32.pop %v1017
    %v1020 = vsinq.f32.pop %v1017
    %vm1021 = vweird.f32 %v309
    %v1022 = vand.u32 %v1018, 3
    %vm1023 = vcmp.lt.s32.totalorder %v1022, 2
    %vm1024 = vcmp.eq.s32.totalorder %v1022, 0
    %v1025 = vxor.u32 %v1020, 2147483648
    %v1026 = vsel %vm1024, %v1019, %v1025
    %vm1027 = vcmp.eq.s32.totalorder %v1022, 2
    %v1028 = vxor.u32 %v1019, 2147483648
    %v1029 = vsel %vm1027, %v1028, %v1020
    %v1030 = vsel %vm1023, %v1026, %v1029
    %v1031 = vsel %vm1021, nan, %v1030
    %v1032 = vand.u32 2147483647, %v310
    %vm1033 = vcmp.le.f32.partialorder %v1032, 0.7853982
    %vm1034 = vcmp.lt.s32.totalorder %v310, 0
    %v1035 = vand.u32 %v310, 2139095040
    %v1036 = vshrl.u32 %v1035, 23
    %v1037 = vsub.s32 %v1036, 127
    %v1038 = vand.u32 2147483647, %v310
    %v1039 = vand.u32 %v1038, 8388607
    %v1040 = vor.u32 %v1039, 8388608
    %v1041 = vsub.s32 0, %v1040
    %v1042 = vadd.s32 %v1037, 1
    %vm1043 = vcmp.gt.s32.totalorder %v1042, 0
    %v1044 = vsel %vm1043, %v1042, 0
    %v1045 = vshrl.u32 %v1044, 5
    %v1046 = vand.u32 %v1044, 31
    %v1047 = vsub.s32 32, %v1046
    %v1048 = vshrl.u32 683565275, %v1047
    %v1049 = vshll.u32 683565275, %v1046
    %v1050 = vshrl.u32 2475754826, %v1047
    %v1051 = vor.u32 %v1049, %v1050
    %v1052 = vshll.u32 2475754826, %v1046
    %v1053 = vshrl.u32 2131351028, %v1047
    %v1054 = vor.u32 %v1052, %v1053
    %v1055 = vshll.u32 2131351028, %v1046
    %v1056 = vshrl.u32 2102212464, %v1047
    %v1057 = vor.u32 %v1055, %v1056
    %v1058 = vshll.u32 2102212464, %v1046
    %v1059 = vshrl.u32 920167782, %v1047
    %v1060 = vor.u32 %v1058, %v1059
    %v1061 = vshll.u32 920167782, %v1046
    %v1062 = vshrl.u32 1326507024, %v1047
    %v1063 = vor.u32 %v1061, %v1062
    %vm1064 = vcmp.lt.s32.totalorder %v1045, 1
    %vm1065 = vcmp.lt.s32.totalorder %v1045, 2
    %vm1066 = vcmp.lt.s32.totalorder %v1045, 3
    %vm1067 = vcmp.lt.s32.totalorder %v1045, 4
    %v1068 = vsel %vm1064, %v1048, %v1051
    %v1069 = vsel %vm1067, %v1057, 2102212464
    %v1070 = vsel %vm1066, %v1054, %v1069
    %v1071 = vsel %vm1065, %v1068, %v1070
    %v1072 = vsel %vm1064, %v1051, %v1054
    %v1073 = vsel %vm1067, %v1060, 920167782
    %v1074 = vsel %vm1066, %v1057, %v1073
    %v1075 = vsel %vm1065, %v1072, %v1074
    %v1076 = vsel %vm1064, %v1054, %v1057
    %v1077 = vsel %vm1067, %v1063, 1326507024
    %v1078 = vsel %vm1066, %v1060, %v1077
    %v1079 = vsel %vm1065, %v1076, %v1078
    %v1080 = vshll.u32 %v1040, 8
    %v1081 = vmul.u32.u64.compose %v1080, %v1079
    %v1082 = vextract.low.u32 %v1081
    %v1083 = vextract.high.u32 %v1081
    %v1084 = vmul.u32.u64.compose %v1080, %v1075
    %v1085 = vextract.low.u32 %v1084
    %v1086 = vextract.high.u32 %v1084
    %v1087 = vmul.u32 %v1080, %v1071
    %v1088 = vadd.s32 %v1083, %v1085
    %vm1089 = vc.u32 %v1083, %v1085
    %v1090 = vadd.s32 %v1086, 1
    %v1091 = vsel %vm1089, %v1090, %v1086
    %v1092 = vadd.s32 %v1087, %v1091
    %v1093 = vadd.s32 %v1092, 536870912
    %v1094 = vshrl.u32 %v1093, 30
    %v1095 = vshll.u32 %v1094, 30
    %v1096 = vsub.s32 %v1092, %v1095
    %vm1097 = vcmp.lt.s32.totalorder %v1096, 0
    %v1098 = vsub.s32 0, %v1096
    %v1099 = vsel %vm1097, %v1098, %v1096
    %v1100 = vclz %v1099
    %v1101 = vsub.s32 %v1100, 2
    %vm1102 = vcmp.gt.s32.totalorder 0, %v1101
    %v1103 = vsel %vm1102, 0, %v1101
    %v1104 = vsub.s32 32, %v1103
    %v1105 = vshll.u32 %v1096, %v1103
    %v1106 = vshrl.u32 %v1088, %v1104
    %v1107 = vor.u32 %v1105, %v1106
    %v1108 = vsub.s32 4294967266, %v1103
    %v1109 = vadd.s32 %v1108, 127
    %v1110 = vshll.u32 %v1109, 23
    %v1111 = vor.u32 4788187, %v1110
    %v1112 = vand.u32 2147483647, %v1111
    %v1114 = vcvt.s32.f32 %v1107
    %v1115 = vmul.f32 %v1114, %v1112
    %v1116 = vxor.u32 %v1115, 2147483648
    %v1117 = vsel %vm1034, %v1116, %v1115
    %v1118 = vsub.s32 4, %v1094
    %v1119 = vsel %vm1034, %v1118, %v1094
    %v1120 = vsel %vm1033, %v310, %v1117
    %v1121 = vsel %vm1033, 0, %v1119
    %v1122 = vcosq.f32.pop %v1120
    %v1123 = vsinq.f32.pop %v1120
    %vm1124 = vweird.f32 %v310
    %v1125 = vand.u32 %v1121, 3
    %vm1126 = vcmp.lt.s32.totalorder %v1125, 2
    %vm1127 = vcmp.eq.s32.totalorder %v1125, 0
    %v1128 = vxor.u32 %v1123, 2147483648
    %v1129 = vsel %vm1127, %v1122, %v1128
    %vm1130 = vcmp.eq.s32.totalorder %v1125, 2
    %v1131 = vxor.u32 %v1122, 2147483648
    %v1132 = vsel %vm1130, %v1131, %v1123
    %v1133 = vsel %vm1126, %v1129, %v1132
    %v1134 = vsel %vm1124, nan, %v1133
    %v1135 = vmul.f32 %v288, %v413
    %v1136 = vmul.f32 %v290, %v516
    %v1137 = vmul.f32 %v292, %v619
    %v1138 = vmul.f32 %v294, %v722
    %v1139 = vmul.f32 %v296, %v825
    %v1140 = vmul.f32 %v298, %v928
    %v1141 = vmul.f32 %v300, %v1031
    %v1142 = vmul.f32 %v302, %v1134
    %1143 = vst [vmem:[#allocation5] sm:$0xff] %v1135
    %1144 = vst [vmem:[#allocation5 + $0x8] sm:$0xff] %v1136
    %1145 = vst [vmem:[#allocation5 + $0x10] sm:$0xff] %v1137
    %1146 = vst [vmem:[#allocation5 + $0x18] sm:$0xff] %v1138
    %1147 = vst [vmem:[#allocation5 + $0x20] sm:$0xff] %v1139
    %1148 = vst [vmem:[#allocation5 + $0x28] sm:$0xff] %v1140
    %1149 = vst [vmem:[#allocation5 + $0x30] sm:$0xff] %v1141
    %1150 = vst [vmem:[#allocation5 + $0x38] sm:$0xff] %v1142
    %v1151 = vand.u32 2147483647, %v303
    %vm1152 = vcmp.le.f32.partialorder %v1151, 0.7853982
    %vm1153 = vcmp.lt.s32.totalorder %v303, 0
    %v1154 = vand.u32 %v303, 2139095040
    %v1155 = vshrl.u32 %v1154, 23
    %v1156 = vsub.s32 %v1155, 127
    %v1157 = vand.u32 2147483647, %v303
    %v1158 = vand.u32 %v1157, 8388607
    %v1159 = vor.u32 %v1158, 8388608
    %v1160 = vsub.s32 0, %v1159
    %v1161 = vadd.s32 %v1156, 1
    %vm1162 = vcmp.gt.s32.totalorder %v1161, 0
    %v1163 = vsel %vm1162, %v1161, 0
    %v1164 = vshrl.u32 %v1163, 5
    %v1165 = vand.u32 %v1163, 31
    %v1166 = vsub.s32 32, %v1165
    %v1167 = vshrl.u32 683565275, %v1166
    %v1168 = vshll.u32 683565275, %v1165
    %v1169 = vshrl.u32 2475754826, %v1166
    %v1170 = vor.u32 %v1168, %v1169
    %v1171 = vshll.u32 2475754826, %v1165
    %v1172 = vshrl.u32 2131351028, %v1166
    %v1173 = vor.u32 %v1171, %v1172
    %v1174 = vshll.u32 2131351028, %v1165
    %v1175 = vshrl.u32 2102212464, %v1166
    %v1176 = vor.u32 %v1174, %v1175
    %v1177 = vshll.u32 2102212464, %v1165
    %v1178 = vshrl.u32 920167782, %v1166
    %v1179 = vor.u32 %v1177, %v1178
    %v1180 = vshll.u32 920167782, %v1165
    %v1181 = vshrl.u32 1326507024, %v1166
    %v1182 = vor.u32 %v1180, %v1181
    %vm1183 = vcmp.lt.s32.totalorder %v1164, 1
    %vm1184 = vcmp.lt.s32.totalorder %v1164, 2
    %vm1185 = vcmp.lt.s32.totalorder %v1164, 3
    %vm1186 = vcmp.lt.s32.totalorder %v1164, 4
    %v1187 = vsel %vm1183, %v1167, %v1170
    %v1188 = vsel %vm1186, %v1176, 2102212464
    %v1189 = vsel %vm1185, %v1173, %v1188
    %v1190 = vsel %vm1184, %v1187, %v1189
    %v1191 = vsel %vm1183, %v1170, %v1173
    %v1192 = vsel %vm1186, %v1179, 920167782
    %v1193 = vsel %vm1185, %v1176, %v1192
    %v1194 = vsel %vm1184, %v1191, %v1193
    %v1195 = vsel %vm1183, %v1173, %v1176
    %v1196 = vsel %vm1186, %v1182, 1326507024
    %v1197 = vsel %vm1185, %v1179, %v1196
    %v1198 = vsel %vm1184, %v1195, %v1197
    %v1199 = vshll.u32 %v1159, 8
    %v1200 = vmul.u32.u64.compose %v1199, %v1198
    %v1201 = vextract.low.u32 %v1200
    %v1202 = vextract.high.u32 %v1200
    %v1203 = vmul.u32.u64.compose %v1199, %v1194
    %v1204 = vextract.low.u32 %v1203
    %v1205 = vextract.high.u32 %v1203
    %v1206 = vmul.u32 %v1199, %v1190
    %v1207 = vadd.s32 %v1202, %v1204
    %vm1208 = vc.u32 %v1202, %v1204
    %v1209 = vadd.s32 %v1205, 1
    %v1210 = vsel %vm1208, %v1209, %v1205
    %v1211 = vadd.s32 %v1206, %v1210
    %v1212 = vadd.s32 %v1211, 536870912
    %v1213 = vshrl.u32 %v1212, 30
    %v1214 = vshll.u32 %v1213, 30
    %v1215 = vsub.s32 %v1211, %v1214
    %vm1216 = vcmp.lt.s32.totalorder %v1215, 0
    %v1217 = vsub.s32 0, %v1215
    %v1218 = vsel %vm1216, %v1217, %v1215
    %v1219 = vclz %v1218
    %v1220 = vsub.s32 %v1219, 2
    %vm1221 = vcmp.gt.s32.totalorder 0, %v1220
    %v1222 = vsel %vm1221, 0, %v1220
    %v1223 = vsub.s32 32, %v1222
    %v1224 = vshll.u32 %v1215, %v1222
    %v1225 = vshrl.u32 %v1207, %v1223
    %v1226 = vor.u32 %v1224, %v1225
    %v1227 = vsub.s32 4294967266, %v1222
    %v1228 = vadd.s32 %v1227, 127
    %v1229 = vshll.u32 %v1228, 23
    %v1230 = vor.u32 4788187, %v1229
    %v1231 = vand.u32 2147483647, %v1230
    %v1233 = vcvt.s32.f32 %v1226
    %v1234 = vmul.f32 %v1233, %v1231
    %v1235 = vxor.u32 %v1234, 2147483648
    %v1236 = vsel %vm1153, %v1235, %v1234
    %v1237 = vsub.s32 4, %v1213
    %v1238 = vsel %vm1153, %v1237, %v1213
    %v1239 = vsel %vm1152, %v303, %v1236
    %v1240 = vsel %vm1152, 0, %v1238
    %v1241 = vcosq.f32.pop %v1239
    %v1242 = vsinq.f32.pop %v1239
    %vm1243 = vweird.f32 %v303
    %v1244 = vadd.s32 %v1240, 3
    %v1245 = vand.u32 %v1244, 3
    %vm1246 = vcmp.lt.s32.totalorder %v1245, 2
    %vm1247 = vcmp.eq.s32.totalorder %v1245, 0
    %v1248 = vxor.u32 %v1242, 2147483648
    %v1249 = vsel %vm1247, %v1241, %v1248
    %vm1250 = vcmp.eq.s32.totalorder %v1245, 2
    %v1251 = vxor.u32 %v1241, 2147483648
    %v1252 = vsel %vm1250, %v1251, %v1242
    %v1253 = vsel %vm1246, %v1249, %v1252
    %v1254 = vsel %vm1243, nan, %v1253
    %v1255 = vand.u32 2147483647, %v304
    %vm1256 = vcmp.le.f32.partialorder %v1255, 0.7853982
    %vm1257 = vcmp.lt.s32.totalorder %v304, 0
    %v1258 = vand.u32 %v304, 2139095040
    %v1259 = vshrl.u32 %v1258, 23
    %v1260 = vsub.s32 %v1259, 127
    %v1261 = vand.u32 2147483647, %v304
    %v1262 = vand.u32 %v1261, 8388607
    %v1263 = vor.u32 %v1262, 8388608
    %v1264 = vsub.s32 0, %v1263
    %v1265 = vadd.s32 %v1260, 1
    %vm1266 = vcmp.gt.s32.totalorder %v1265, 0
    %v1267 = vsel %vm1266, %v1265, 0
    %v1268 = vshrl.u32 %v1267, 5
    %v1269 = vand.u32 %v1267, 31
    %v1270 = vsub.s32 32, %v1269
    %v1271 = vshrl.u32 683565275, %v1270
    %v1272 = vshll.u32 683565275, %v1269
    %v1273 = vshrl.u32 2475754826, %v1270
    %v1274 = vor.u32 %v1272, %v1273
    %v1275 = vshll.u32 2475754826, %v1269
    %v1276 = vshrl.u32 2131351028, %v1270
    %v1277 = vor.u32 %v1275, %v1276
    %v1278 = vshll.u32 2131351028, %v1269
    %v1279 = vshrl.u32 2102212464, %v1270
    %v1280 = vor.u32 %v1278, %v1279
    %v1281 = vshll.u32 2102212464, %v1269
    %v1282 = vshrl.u32 920167782, %v1270
    %v1283 = vor.u32 %v1281, %v1282
    %v1284 = vshll.u32 920167782, %v1269
    %v1285 = vshrl.u32 1326507024, %v1270
    %v1286 = vor.u32 %v1284, %v1285
    %vm1287 = vcmp.lt.s32.totalorder %v1268, 1
    %vm1288 = vcmp.lt.s32.totalorder %v1268, 2
    %vm1289 = vcmp.lt.s32.totalorder %v1268, 3
    %vm1290 = vcmp.lt.s32.totalorder %v1268, 4
    %v1291 = vsel %vm1287, %v1271, %v1274
    %v1292 = vsel %vm1290, %v1280, 2102212464
    %v1293 = vsel %vm1289, %v1277, %v1292
    %v1294 = vsel %vm1288, %v1291, %v1293
    %v1295 = vsel %vm1287, %v1274, %v1277
    %v1296 = vsel %vm1290, %v1283, 920167782
    %v1297 = vsel %vm1289, %v1280, %v1296
    %v1298 = vsel %vm1288, %v1295, %v1297
    %v1299 = vsel %vm1287, %v1277, %v1280
    %v1300 = vsel %vm1290, %v1286, 1326507024
    %v1301 = vsel %vm1289, %v1283, %v1300
    %v1302 = vsel %vm1288, %v1299, %v1301
    %v1303 = vshll.u32 %v1263, 8
    %v1304 = vmul.u32.u64.compose %v1303, %v1302
    %v1305 = vextract.low.u32 %v1304
    %v1306 = vextract.high.u32 %v1304
    %v1307 = vmul.u32.u64.compose %v1303, %v1298
    %v1308 = vextract.low.u32 %v1307
    %v1309 = vextract.high.u32 %v1307
    %v1310 = vmul.u32 %v1303, %v1294
    %v1311 = vadd.s32 %v1306, %v1308
    %vm1312 = vc.u32 %v1306, %v1308
    %v1313 = vadd.s32 %v1309, 1
    %v1314 = vsel %vm1312, %v1313, %v1309
    %v1315 = vadd.s32 %v1310, %v1314
    %v1316 = vadd.s32 %v1315, 536870912
    %v1317 = vshrl.u32 %v1316, 30
    %v1318 = vshll.u32 %v1317, 30
    %v1319 = vsub.s32 %v1315, %v1318
    %vm1320 = vcmp.lt.s32.totalorder %v1319, 0
    %v1321 = vsub.s32 0, %v1319
    %v1322 = vsel %vm1320, %v1321, %v1319
    %v1323 = vclz %v1322
    %v1324 = vsub.s32 %v1323, 2
    %vm1325 = vcmp.gt.s32.totalorder 0, %v1324
    %v1326 = vsel %vm1325, 0, %v1324
    %v1327 = vsub.s32 32, %v1326
    %v1328 = vshll.u32 %v1319, %v1326
    %v1329 = vshrl.u32 %v1311, %v1327
    %v1330 = vor.u32 %v1328, %v1329
    %v1331 = vsub.s32 4294967266, %v1326
    %v1332 = vadd.s32 %v1331, 127
    %v1333 = vshll.u32 %v1332, 23
    %v1334 = vor.u32 4788187, %v1333
    %v1335 = vand.u32 2147483647, %v1334
    %v1337 = vcvt.s32.f32 %v1330
    %v1338 = vmul.f32 %v1337, %v1335
    %v1339 = vxor.u32 %v1338, 2147483648
    %v1340 = vsel %vm1257, %v1339, %v1338
    %v1341 = vsub.s32 4, %v1317
    %v1342 = vsel %vm1257, %v1341, %v1317
    %v1343 = vsel %vm1256, %v304, %v1340
    %v1344 = vsel %vm1256, 0, %v1342
    %v1345 = vcosq.f32.pop %v1343
    %v1346 = vsinq.f32.pop %v1343
    %vm1347 = vweird.f32 %v304
    %v1348 = vadd.s32 %v1344, 3
    %v1349 = vand.u32 %v1348, 3
    %vm1350 = vcmp.lt.s32.totalorder %v1349, 2
    %vm1351 = vcmp.eq.s32.totalorder %v1349, 0
    %v1352 = vxor.u32 %v1346, 2147483648
    %v1353 = vsel %vm1351, %v1345, %v1352
    %vm1354 = vcmp.eq.s32.totalorder %v1349, 2
    %v1355 = vxor.u32 %v1345, 2147483648
    %v1356 = vsel %vm1354, %v1355, %v1346
    %v1357 = vsel %vm1350, %v1353, %v1356
    %v1358 = vsel %vm1347, nan, %v1357
    %v1359 = vand.u32 2147483647, %v305
    %vm1360 = vcmp.le.f32.partialorder %v1359, 0.7853982
    %vm1361 = vcmp.lt.s32.totalorder %v305, 0
    %v1362 = vand.u32 %v305, 2139095040
    %v1363 = vshrl.u32 %v1362, 23
    %v1364 = vsub.s32 %v1363, 127
    %v1365 = vand.u32 2147483647, %v305
    %v1366 = vand.u32 %v1365, 8388607
    %v1367 = vor.u32 %v1366, 8388608
    %v1368 = vsub.s32 0, %v1367
    %v1369 = vadd.s32 %v1364, 1
    %vm1370 = vcmp.gt.s32.totalorder %v1369, 0
    %v1371 = vsel %vm1370, %v1369, 0
    %v1372 = vshrl.u32 %v1371, 5
    %v1373 = vand.u32 %v1371, 31
    %v1374 = vsub.s32 32, %v1373
    %v1375 = vshrl.u32 683565275, %v1374
    %v1376 = vshll.u32 683565275, %v1373
    %v1377 = vshrl.u32 2475754826, %v1374
    %v1378 = vor.u32 %v1376, %v1377
    %v1379 = vshll.u32 2475754826, %v1373
    %v1380 = vshrl.u32 2131351028, %v1374
    %v1381 = vor.u32 %v1379, %v1380
    %v1382 = vshll.u32 2131351028, %v1373
    %v1383 = vshrl.u32 2102212464, %v1374
    %v1384 = vor.u32 %v1382, %v1383
    %v1385 = vshll.u32 2102212464, %v1373
    %v1386 = vshrl.u32 920167782, %v1374
    %v1387 = vor.u32 %v1385, %v1386
    %v1388 = vshll.u32 920167782, %v1373
    %v1389 = vshrl.u32 1326507024, %v1374
    %v1390 = vor.u32 %v1388, %v1389
    %vm1391 = vcmp.lt.s32.totalorder %v1372, 1
    %vm1392 = vcmp.lt.s32.totalorder %v1372, 2
    %vm1393 = vcmp.lt.s32.totalorder %v1372, 3
    %vm1394 = vcmp.lt.s32.totalorder %v1372, 4
    %v1395 = vsel %vm1391, %v1375, %v1378
    %v1396 = vsel %vm1394, %v1384, 2102212464
    %v1397 = vsel %vm1393, %v1381, %v1396
    %v1398 = vsel %vm1392, %v1395, %v1397
    %v1399 = vsel %vm1391, %v1378, %v1381
    %v1400 = vsel %vm1394, %v1387, 920167782
    %v1401 = vsel %vm1393, %v1384, %v1400
    %v1402 = vsel %vm1392, %v1399, %v1401
    %v1403 = vsel %vm1391, %v1381, %v1384
    %v1404 = vsel %vm1394, %v1390, 1326507024
    %v1405 = vsel %vm1393, %v1387, %v1404
    %v1406 = vsel %vm1392, %v1403, %v1405
    %v1407 = vshll.u32 %v1367, 8
    %v1408 = vmul.u32.u64.compose %v1407, %v1406
    %v1409 = vextract.low.u32 %v1408
    %v1410 = vextract.high.u32 %v1408
    %v1411 = vmul.u32.u64.compose %v1407, %v1402
    %v1412 = vextract.low.u32 %v1411
    %v1413 = vextract.high.u32 %v1411
    %v1414 = vmul.u32 %v1407, %v1398
    %v1415 = vadd.s32 %v1410, %v1412
    %vm1416 = vc.u32 %v1410, %v1412
    %v1417 = vadd.s32 %v1413, 1
    %v1418 = vsel %vm1416, %v1417, %v1413
    %v1419 = vadd.s32 %v1414, %v1418
    %v1420 = vadd.s32 %v1419, 536870912
    %v1421 = vshrl.u32 %v1420, 30
    %v1422 = vshll.u32 %v1421, 30
    %v1423 = vsub.s32 %v1419, %v1422
    %vm1424 = vcmp.lt.s32.totalorder %v1423, 0
    %v1425 = vsub.s32 0, %v1423
    %v1426 = vsel %vm1424, %v1425, %v1423
    %v1427 = vclz %v1426
    %v1428 = vsub.s32 %v1427, 2
    %vm1429 = vcmp.gt.s32.totalorder 0, %v1428
    %v1430 = vsel %vm1429, 0, %v1428
    %v1431 = vsub.s32 32, %v1430
    %v1432 = vshll.u32 %v1423, %v1430
    %v1433 = vshrl.u32 %v1415, %v1431
    %v1434 = vor.u32 %v1432, %v1433
    %v1435 = vsub.s32 4294967266, %v1430
    %v1436 = vadd.s32 %v1435, 127
    %v1437 = vshll.u32 %v1436, 23
    %v1438 = vor.u32 4788187, %v1437
    %v1439 = vand.u32 2147483647, %v1438
    %v1441 = vcvt.s32.f32 %v1434
    %v1442 = vmul.f32 %v1441, %v1439
    %v1443 = vxor.u32 %v1442, 2147483648
    %v1444 = vsel %vm1361, %v1443, %v1442
    %v1445 = vsub.s32 4, %v1421
    %v1446 = vsel %vm1361, %v1445, %v1421
    %v1447 = vsel %vm1360, %v305, %v1444
    %v1448 = vsel %vm1360, 0, %v1446
    %v1449 = vcosq.f32.pop %v1447
    %v1450 = vsinq.f32.pop %v1447
    %vm1451 = vweird.f32 %v305
    %v1452 = vadd.s32 %v1448, 3
    %v1453 = vand.u32 %v1452, 3
    %vm1454 = vcmp.lt.s32.totalorder %v1453, 2
    %vm1455 = vcmp.eq.s32.totalorder %v1453, 0
    %v1456 = vxor.u32 %v1450, 2147483648
    %v1457 = vsel %vm1455, %v1449, %v1456
    %vm1458 = vcmp.eq.s32.totalorder %v1453, 2
    %v1459 = vxor.u32 %v1449, 2147483648
    %v1460 = vsel %vm1458, %v1459, %v1450
    %v1461 = vsel %vm1454, %v1457, %v1460
    %v1462 = vsel %vm1451, nan, %v1461
    %v1463 = vand.u32 2147483647, %v306
    %vm1464 = vcmp.le.f32.partialorder %v1463, 0.7853982
    %vm1465 = vcmp.lt.s32.totalorder %v306, 0
    %v1466 = vand.u32 %v306, 2139095040
    %v1467 = vshrl.u32 %v1466, 23
    %v1468 = vsub.s32 %v1467, 127
    %v1469 = vand.u32 2147483647, %v306
    %v1470 = vand.u32 %v1469, 8388607
    %v1471 = vor.u32 %v1470, 8388608
    %v1472 = vsub.s32 0, %v1471
    %v1473 = vadd.s32 %v1468, 1
    %vm1474 = vcmp.gt.s32.totalorder %v1473, 0
    %v1475 = vsel %vm1474, %v1473, 0
    %v1476 = vshrl.u32 %v1475, 5
    %v1477 = vand.u32 %v1475, 31
    %v1478 = vsub.s32 32, %v1477
    %v1479 = vshrl.u32 683565275, %v1478
    %v1480 = vshll.u32 683565275, %v1477
    %v1481 = vshrl.u32 2475754826, %v1478
    %v1482 = vor.u32 %v1480, %v1481
    %v1483 = vshll.u32 2475754826, %v1477
    %v1484 = vshrl.u32 2131351028, %v1478
    %v1485 = vor.u32 %v1483, %v1484
    %v1486 = vshll.u32 2131351028, %v1477
    %v1487 = vshrl.u32 2102212464, %v1478
    %v1488 = vor.u32 %v1486, %v1487
    %v1489 = vshll.u32 2102212464, %v1477
    %v1490 = vshrl.u32 920167782, %v1478
    %v1491 = vor.u32 %v1489, %v1490
    %v1492 = vshll.u32 920167782, %v1477
    %v1493 = vshrl.u32 1326507024, %v1478
    %v1494 = vor.u32 %v1492, %v1493
    %vm1495 = vcmp.lt.s32.totalorder %v1476, 1
    %vm1496 = vcmp.lt.s32.totalorder %v1476, 2
    %vm1497 = vcmp.lt.s32.totalorder %v1476, 3
    %vm1498 = vcmp.lt.s32.totalorder %v1476, 4
    %v1499 = vsel %vm1495, %v1479, %v1482
    %v1500 = vsel %vm1498, %v1488, 2102212464
    %v1501 = vsel %vm1497, %v1485, %v1500
    %v1502 = vsel %vm1496, %v1499, %v1501
    %v1503 = vsel %vm1495, %v1482, %v1485
    %v1504 = vsel %vm1498, %v1491, 920167782
    %v1505 = vsel %vm1497, %v1488, %v1504
    %v1506 = vsel %vm1496, %v1503, %v1505
    %v1507 = vsel %vm1495, %v1485, %v1488
    %v1508 = vsel %vm1498, %v1494, 1326507024
    %v1509 = vsel %vm1497, %v1491, %v1508
    %v1510 = vsel %vm1496, %v1507, %v1509
    %v1511 = vshll.u32 %v1471, 8
    %v1512 = vmul.u32.u64.compose %v1511, %v1510
    %v1513 = vextract.low.u32 %v1512
    %v1514 = vextract.high.u32 %v1512
    %v1515 = vmul.u32.u64.compose %v1511, %v1506
    %v1516 = vextract.low.u32 %v1515
    %v1517 = vextract.high.u32 %v1515
    %v1518 = vmul.u32 %v1511, %v1502
    %v1519 = vadd.s32 %v1514, %v1516
    %vm1520 = vc.u32 %v1514, %v1516
    %v1521 = vadd.s32 %v1517, 1
    %v1522 = vsel %vm1520, %v1521, %v1517
    %v1523 = vadd.s32 %v1518, %v1522
    %v1524 = vadd.s32 %v1523, 536870912
    %v1525 = vshrl.u32 %v1524, 30
    %v1526 = vshll.u32 %v1525, 30
    %v1527 = vsub.s32 %v1523, %v1526
    %vm1528 = vcmp.lt.s32.totalorder %v1527, 0
    %v1529 = vsub.s32 0, %v1527
    %v1530 = vsel %vm1528, %v1529, %v1527
    %v1531 = vclz %v1530
    %v1532 = vsub.s32 %v1531, 2
    %vm1533 = vcmp.gt.s32.totalorder 0, %v1532
    %v1534 = vsel %vm1533, 0, %v1532
    %v1535 = vsub.s32 32, %v1534
    %v1536 = vshll.u32 %v1527, %v1534
    %v1537 = vshrl.u32 %v1519, %v1535
    %v1538 = vor.u32 %v1536, %v1537
    %v1539 = vsub.s32 4294967266, %v1534
    %v1540 = vadd.s32 %v1539, 127
    %v1541 = vshll.u32 %v1540, 23
    %v1542 = vor.u32 4788187, %v1541
    %v1543 = vand.u32 2147483647, %v1542
    %v1545 = vcvt.s32.f32 %v1538
    %v1546 = vmul.f32 %v1545, %v1543
    %v1547 = vxor.u32 %v1546, 2147483648
    %v1548 = vsel %vm1465, %v1547, %v1546
    %v1549 = vsub.s32 4, %v1525
    %v1550 = vsel %vm1465, %v1549, %v1525
    %v1551 = vsel %vm1464, %v306, %v1548
    %v1552 = vsel %vm1464, 0, %v1550
    %v1553 = vcosq.f32.pop %v1551
    %v1554 = vsinq.f32.pop %v1551
    %vm1555 = vweird.f32 %v306
    %v1556 = vadd.s32 %v1552, 3
    %v1557 = vand.u32 %v1556, 3
    %vm1558 = vcmp.lt.s32.totalorder %v1557, 2
    %vm1559 = vcmp.eq.s32.totalorder %v1557, 0
    %v1560 = vxor.u32 %v1554, 2147483648
    %v1561 = vsel %vm1559, %v1553, %v1560
    %vm1562 = vcmp.eq.s32.totalorder %v1557, 2
    %v1563 = vxor.u32 %v1553, 2147483648
    %v1564 = vsel %vm1562, %v1563, %v1554
    %v1565 = vsel %vm1558, %v1561, %v1564
    %v1566 = vsel %vm1555, nan, %v1565
    %v1567 = vand.u32 2147483647, %v307
    %vm1568 = vcmp.le.f32.partialorder %v1567, 0.7853982
    %vm1569 = vcmp.lt.s32.totalorder %v307, 0
    %v1570 = vand.u32 %v307, 2139095040
    %v1571 = vshrl.u32 %v1570, 23
    %v1572 = vsub.s32 %v1571, 127
    %v1573 = vand.u32 2147483647, %v307
    %v1574 = vand.u32 %v1573, 8388607
    %v1575 = vor.u32 %v1574, 8388608
    %v1576 = vsub.s32 0, %v1575
    %v1577 = vadd.s32 %v1572, 1
    %vm1578 = vcmp.gt.s32.totalorder %v1577, 0
    %v1579 = vsel %vm1578, %v1577, 0
    %v1580 = vshrl.u32 %v1579, 5
    %v1581 = vand.u32 %v1579, 31
    %v1582 = vsub.s32 32, %v1581
    %v1583 = vshrl.u32 683565275, %v1582
    %v1584 = vshll.u32 683565275, %v1581
    %v1585 = vshrl.u32 2475754826, %v1582
    %v1586 = vor.u32 %v1584, %v1585
    %v1587 = vshll.u32 2475754826, %v1581
    %v1588 = vshrl.u32 2131351028, %v1582
    %v1589 = vor.u32 %v1587, %v1588
    %v1590 = vshll.u32 2131351028, %v1581
    %v1591 = vshrl.u32 2102212464, %v1582
    %v1592 = vor.u32 %v1590, %v1591
    %v1593 = vshll.u32 2102212464, %v1581
    %v1594 = vshrl.u32 920167782, %v1582
    %v1595 = vor.u32 %v1593, %v1594
    %v1596 = vshll.u32 920167782, %v1581
    %v1597 = vshrl.u32 1326507024, %v1582
    %v1598 = vor.u32 %v1596, %v1597
    %vm1599 = vcmp.lt.s32.totalorder %v1580, 1
    %vm1600 = vcmp.lt.s32.totalorder %v1580, 2
    %vm1601 = vcmp.lt.s32.totalorder %v1580, 3
    %vm1602 = vcmp.lt.s32.totalorder %v1580, 4
    %v1603 = vsel %vm1599, %v1583, %v1586
    %v1604 = vsel %vm1602, %v1592, 2102212464
    %v1605 = vsel %vm1601, %v1589, %v1604
    %v1606 = vsel %vm1600, %v1603, %v1605
    %v1607 = vsel %vm1599, %v1586, %v1589
    %v1608 = vsel %vm1602, %v1595, 920167782
    %v1609 = vsel %vm1601, %v1592, %v1608
    %v1610 = vsel %vm1600, %v1607, %v1609
    %v1611 = vsel %vm1599, %v1589, %v1592
    %v1612 = vsel %vm1602, %v1598, 1326507024
    %v1613 = vsel %vm1601, %v1595, %v1612
    %v1614 = vsel %vm1600, %v1611, %v1613
    %v1615 = vshll.u32 %v1575, 8
    %v1616 = vmul.u32.u64.compose %v1615, %v1614
    %v1617 = vextract.low.u32 %v1616
    %v1618 = vextract.high.u32 %v1616
    %v1619 = vmul.u32.u64.compose %v1615, %v1610
    %v1620 = vextract.low.u32 %v1619
    %v1621 = vextract.high.u32 %v1619
    %v1622 = vmul.u32 %v1615, %v1606
    %v1623 = vadd.s32 %v1618, %v1620
    %vm1624 = vc.u32 %v1618, %v1620
    %v1625 = vadd.s32 %v1621, 1
    %v1626 = vsel %vm1624, %v1625, %v1621
    %v1627 = vadd.s32 %v1622, %v1626
    %v1628 = vadd.s32 %v1627, 536870912
    %v1629 = vshrl.u32 %v1628, 30
    %v1630 = vshll.u32 %v1629, 30
    %v1631 = vsub.s32 %v1627, %v1630
    %vm1632 = vcmp.lt.s32.totalorder %v1631, 0
    %v1633 = vsub.s32 0, %v1631
    %v1634 = vsel %vm1632, %v1633, %v1631
    %v1635 = vclz %v1634
    %v1636 = vsub.s32 %v1635, 2
    %vm1637 = vcmp.gt.s32.totalorder 0, %v1636
    %v1638 = vsel %vm1637, 0, %v1636
    %v1639 = vsub.s32 32, %v1638
    %v1640 = vshll.u32 %v1631, %v1638
    %v1641 = vshrl.u32 %v1623, %v1639
    %v1642 = vor.u32 %v1640, %v1641
    %v1643 = vsub.s32 4294967266, %v1638
    %v1644 = vadd.s32 %v1643, 127
    %v1645 = vshll.u32 %v1644, 23
    %v1646 = vor.u32 4788187, %v1645
    %v1647 = vand.u32 2147483647, %v1646
    %v1649 = vcvt.s32.f32 %v1642
    %v1650 = vmul.f32 %v1649, %v1647
    %v1651 = vxor.u32 %v1650, 2147483648
    %v1652 = vsel %vm1569, %v1651, %v1650
    %v1653 = vsub.s32 4, %v1629
    %v1654 = vsel %vm1569, %v1653, %v1629
    %v1655 = vsel %vm1568, %v307, %v1652
    %v1656 = vsel %vm1568, 0, %v1654
    %v1657 = vcosq.f32.pop %v1655
    %v1658 = vsinq.f32.pop %v1655
    %vm1659 = vweird.f32 %v307
    %v1660 = vadd.s32 %v1656, 3
    %v1661 = vand.u32 %v1660, 3
    %vm1662 = vcmp.lt.s32.totalorder %v1661, 2
    %vm1663 = vcmp.eq.s32.totalorder %v1661, 0
    %v1664 = vxor.u32 %v1658, 2147483648
    %v1665 = vsel %vm1663, %v1657, %v1664
    %vm1666 = vcmp.eq.s32.totalorder %v1661, 2
    %v1667 = vxor.u32 %v1657, 2147483648
    %v1668 = vsel %vm1666, %v1667, %v1658
    %v1669 = vsel %vm1662, %v1665, %v1668
    %v1670 = vsel %vm1659, nan, %v1669
    %v1671 = vand.u32 2147483647, %v308
    %vm1672 = vcmp.le.f32.partialorder %v1671, 0.7853982
    %vm1673 = vcmp.lt.s32.totalorder %v308, 0
    %v1674 = vand.u32 %v308, 2139095040
    %v1675 = vshrl.u32 %v1674, 23
    %v1676 = vsub.s32 %v1675, 127
    %v1677 = vand.u32 2147483647, %v308
    %v1678 = vand.u32 %v1677, 8388607
    %v1679 = vor.u32 %v1678, 8388608
    %v1680 = vsub.s32 0, %v1679
    %v1681 = vadd.s32 %v1676, 1
    %vm1682 = vcmp.gt.s32.totalorder %v1681, 0
    %v1683 = vsel %vm1682, %v1681, 0
    %v1684 = vshrl.u32 %v1683, 5
    %v1685 = vand.u32 %v1683, 31
    %v1686 = vsub.s32 32, %v1685
    %v1687 = vshrl.u32 683565275, %v1686
    %v1688 = vshll.u32 683565275, %v1685
    %v1689 = vshrl.u32 2475754826, %v1686
    %v1690 = vor.u32 %v1688, %v1689
    %v1691 = vshll.u32 2475754826, %v1685
    %v1692 = vshrl.u32 2131351028, %v1686
    %v1693 = vor.u32 %v1691, %v1692
    %v1694 = vshll.u32 2131351028, %v1685
    %v1695 = vshrl.u32 2102212464, %v1686
    %v1696 = vor.u32 %v1694, %v1695
    %v1697 = vshll.u32 2102212464, %v1685
    %v1698 = vshrl.u32 920167782, %v1686
    %v1699 = vor.u32 %v1697, %v1698
    %v1700 = vshll.u32 920167782, %v1685
    %v1701 = vshrl.u32 1326507024, %v1686
    %v1702 = vor.u32 %v1700, %v1701
    %vm1703 = vcmp.lt.s32.totalorder %v1684, 1
    %vm1704 = vcmp.lt.s32.totalorder %v1684, 2
    %vm1705 = vcmp.lt.s32.totalorder %v1684, 3
    %vm1706 = vcmp.lt.s32.totalorder %v1684, 4
    %v1707 = vsel %vm1703, %v1687, %v1690
    %v1708 = vsel %vm1706, %v1696, 2102212464
    %v1709 = vsel %vm1705, %v1693, %v1708
    %v1710 = vsel %vm1704, %v1707, %v1709
    %v1711 = vsel %vm1703, %v1690, %v1693
    %v1712 = vsel %vm1706, %v1699, 920167782
    %v1713 = vsel %vm1705, %v1696, %v1712
    %v1714 = vsel %vm1704, %v1711, %v1713
    %v1715 = vsel %vm1703, %v1693, %v1696
    %v1716 = vsel %vm1706, %v1702, 1326507024
    %v1717 = vsel %vm1705, %v1699, %v1716
    %v1718 = vsel %vm1704, %v1715, %v1717
    %v1719 = vshll.u32 %v1679, 8
    %v1720 = vmul.u32.u64.compose %v1719, %v1718
    %v1721 = vextract.low.u32 %v1720
    %v1722 = vextract.high.u32 %v1720
    %v1723 = vmul.u32.u64.compose %v1719, %v1714
    %v1724 = vextract.low.u32 %v1723
    %v1725 = vextract.high.u32 %v1723
    %v1726 = vmul.u32 %v1719, %v1710
    %v1727 = vadd.s32 %v1722, %v1724
    %vm1728 = vc.u32 %v1722, %v1724
    %v1729 = vadd.s32 %v1725, 1
    %v1730 = vsel %vm1728, %v1729, %v1725
    %v1731 = vadd.s32 %v1726, %v1730
    %v1732 = vadd.s32 %v1731, 536870912
    %v1733 = vshrl.u32 %v1732, 30
    %v1734 = vshll.u32 %v1733, 30
    %v1735 = vsub.s32 %v1731, %v1734
    %vm1736 = vcmp.lt.s32.totalorder %v1735, 0
    %v1737 = vsub.s32 0, %v1735
    %v1738 = vsel %vm1736, %v1737, %v1735
    %v1739 = vclz %v1738
    %v1740 = vsub.s32 %v1739, 2
    %vm1741 = vcmp.gt.s32.totalorder 0, %v1740
    %v1742 = vsel %vm1741, 0, %v1740
    %v1743 = vsub.s32 32, %v1742
    %v1744 = vshll.u32 %v1735, %v1742
    %v1745 = vshrl.u32 %v1727, %v1743
    %v1746 = vor.u32 %v1744, %v1745
    %v1747 = vsub.s32 4294967266, %v1742
    %v1748 = vadd.s32 %v1747, 127
    %v1749 = vshll.u32 %v1748, 23
    %v1750 = vor.u32 4788187, %v1749
    %v1751 = vand.u32 2147483647, %v1750
    %v1753 = vcvt.s32.f32 %v1746
    %v1754 = vmul.f32 %v1753, %v1751
    %v1755 = vxor.u32 %v1754, 2147483648
    %v1756 = vsel %vm1673, %v1755, %v1754
    %v1757 = vsub.s32 4, %v1733
    %v1758 = vsel %vm1673, %v1757, %v1733
    %v1759 = vsel %vm1672, %v308, %v1756
    %v1760 = vsel %vm1672, 0, %v1758
    %v1761 = vcosq.f32.pop %v1759
    %v1762 = vsinq.f32.pop %v1759
    %vm1763 = vweird.f32 %v308
    %v1764 = vadd.s32 %v1760, 3
    %v1765 = vand.u32 %v1764, 3
    %vm1766 = vcmp.lt.s32.totalorder %v1765, 2
    %vm1767 = vcmp.eq.s32.totalorder %v1765, 0
    %v1768 = vxor.u32 %v1762, 2147483648
    %v1769 = vsel %vm1767, %v1761, %v1768
    %vm1770 = vcmp.eq.s32.totalorder %v1765, 2
    %v1771 = vxor.u32 %v1761, 2147483648
    %v1772 = vsel %vm1770, %v1771, %v1762
    %v1773 = vsel %vm1766, %v1769, %v1772
    %v1774 = vsel %vm1763, nan, %v1773
    %v1775 = vand.u32 2147483647, %v309
    %vm1776 = vcmp.le.f32.partialorder %v1775, 0.7853982
    %vm1777 = vcmp.lt.s32.totalorder %v309, 0
    %v1778 = vand.u32 %v309, 2139095040
    %v1779 = vshrl.u32 %v1778, 23
    %v1780 = vsub.s32 %v1779, 127
    %v1781 = vand.u32 2147483647, %v309
    %v1782 = vand.u32 %v1781, 8388607
    %v1783 = vor.u32 %v1782, 8388608
    %v1784 = vsub.s32 0, %v1783
    %v1785 = vadd.s32 %v1780, 1
    %vm1786 = vcmp.gt.s32.totalorder %v1785, 0
    %v1787 = vsel %vm1786, %v1785, 0
    %v1788 = vshrl.u32 %v1787, 5
    %v1789 = vand.u32 %v1787, 31
    %v1790 = vsub.s32 32, %v1789
    %v1791 = vshrl.u32 683565275, %v1790
    %v1792 = vshll.u32 683565275, %v1789
    %v1793 = vshrl.u32 2475754826, %v1790
    %v1794 = vor.u32 %v1792, %v1793
    %v1795 = vshll.u32 2475754826, %v1789
    %v1796 = vshrl.u32 2131351028, %v1790
    %v1797 = vor.u32 %v1795, %v1796
    %v1798 = vshll.u32 2131351028, %v1789
    %v1799 = vshrl.u32 2102212464, %v1790
    %v1800 = vor.u32 %v1798, %v1799
    %v1801 = vshll.u32 2102212464, %v1789
    %v1802 = vshrl.u32 920167782, %v1790
    %v1803 = vor.u32 %v1801, %v1802
    %v1804 = vshll.u32 920167782, %v1789
    %v1805 = vshrl.u32 1326507024, %v1790
    %v1806 = vor.u32 %v1804, %v1805
    %vm1807 = vcmp.lt.s32.totalorder %v1788, 1
    %vm1808 = vcmp.lt.s32.totalorder %v1788, 2
    %vm1809 = vcmp.lt.s32.totalorder %v1788, 3
    %vm1810 = vcmp.lt.s32.totalorder %v1788, 4
    %v1811 = vsel %vm1807, %v1791, %v1794
    %v1812 = vsel %vm1810, %v1800, 2102212464
    %v1813 = vsel %vm1809, %v1797, %v1812
    %v1814 = vsel %vm1808, %v1811, %v1813
    %v1815 = vsel %vm1807, %v1794, %v1797
    %v1816 = vsel %vm1810, %v1803, 920167782
    %v1817 = vsel %vm1809, %v1800, %v1816
    %v1818 = vsel %vm1808, %v1815, %v1817
    %v1819 = vsel %vm1807, %v1797, %v1800
    %v1820 = vsel %vm1810, %v1806, 1326507024
    %v1821 = vsel %vm1809, %v1803, %v1820
    %v1822 = vsel %vm1808, %v1819, %v1821
    %v1823 = vshll.u32 %v1783, 8
    %v1824 = vmul.u32.u64.compose %v1823, %v1822
    %v1825 = vextract.low.u32 %v1824
    %v1826 = vextract.high.u32 %v1824
    %v1827 = vmul.u32.u64.compose %v1823, %v1818
    %v1828 = vextract.low.u32 %v1827
    %v1829 = vextract.high.u32 %v1827
    %v1830 = vmul.u32 %v1823, %v1814
    %v1831 = vadd.s32 %v1826, %v1828
    %vm1832 = vc.u32 %v1826, %v1828
    %v1833 = vadd.s32 %v1829, 1
    %v1834 = vsel %vm1832, %v1833, %v1829
    %v1835 = vadd.s32 %v1830, %v1834
    %v1836 = vadd.s32 %v1835, 536870912
    %v1837 = vshrl.u32 %v1836, 30
    %v1838 = vshll.u32 %v1837, 30
    %v1839 = vsub.s32 %v1835, %v1838
    %vm1840 = vcmp.lt.s32.totalorder %v1839, 0
    %v1841 = vsub.s32 0, %v1839
    %v1842 = vsel %vm1840, %v1841, %v1839
    %v1843 = vclz %v1842
    %v1844 = vsub.s32 %v1843, 2
    %vm1845 = vcmp.gt.s32.totalorder 0, %v1844
    %v1846 = vsel %vm1845, 0, %v1844
    %v1847 = vsub.s32 32, %v1846
    %v1848 = vshll.u32 %v1839, %v1846
    %v1849 = vshrl.u32 %v1831, %v1847
    %v1850 = vor.u32 %v1848, %v1849
    %v1851 = vsub.s32 4294967266, %v1846
    %v1852 = vadd.s32 %v1851, 127
    %v1853 = vshll.u32 %v1852, 23
    %v1854 = vor.u32 4788187, %v1853
    %v1855 = vand.u32 2147483647, %v1854
    %v1857 = vcvt.s32.f32 %v1850
    %v1858 = vmul.f32 %v1857, %v1855
    %v1859 = vxor.u32 %v1858, 2147483648
    %v1860 = vsel %vm1777, %v1859, %v1858
    %v1861 = vsub.s32 4, %v1837
    %v1862 = vsel %vm1777, %v1861, %v1837
    %v1863 = vsel %vm1776, %v309, %v1860
    %v1864 = vsel %vm1776, 0, %v1862
    %v1865 = vcosq.f32.pop %v1863
    %v1866 = vsinq.f32.pop %v1863
    %vm1867 = vweird.f32 %v309
    %v1868 = vadd.s32 %v1864, 3
    %v1869 = vand.u32 %v1868, 3
    %vm1870 = vcmp.lt.s32.totalorder %v1869, 2
    %vm1871 = vcmp.eq.s32.totalorder %v1869, 0
    %v1872 = vxor.u32 %v1866, 2147483648
    %v1873 = vsel %vm1871, %v1865, %v1872
    %vm1874 = vcmp.eq.s32.totalorder %v1869, 2
    %v1875 = vxor.u32 %v1865, 2147483648
    %v1876 = vsel %vm1874, %v1875, %v1866
    %v1877 = vsel %vm1870, %v1873, %v1876
    %v1878 = vsel %vm1867, nan, %v1877
    %v1879 = vand.u32 2147483647, %v310
    %vm1880 = vcmp.le.f32.partialorder %v1879, 0.7853982
    %vm1881 = vcmp.lt.s32.totalorder %v310, 0
    %v1882 = vand.u32 %v310, 2139095040
    %v1883 = vshrl.u32 %v1882, 23
    %v1884 = vsub.s32 %v1883, 127
    %v1885 = vand.u32 2147483647, %v310
    %v1886 = vand.u32 %v1885, 8388607
    %v1887 = vor.u32 %v1886, 8388608
    %v1888 = vsub.s32 0, %v1887
    %v1889 = vadd.s32 %v1884, 1
    %vm1890 = vcmp.gt.s32.totalorder %v1889, 0
    %v1891 = vsel %vm1890, %v1889, 0
    %v1892 = vshrl.u32 %v1891, 5
    %v1893 = vand.u32 %v1891, 31
    %v1894 = vsub.s32 32, %v1893
    %v1895 = vshrl.u32 683565275, %v1894
    %v1896 = vshll.u32 683565275, %v1893
    %v1897 = vshrl.u32 2475754826, %v1894
    %v1898 = vor.u32 %v1896, %v1897
    %v1899 = vshll.u32 2475754826, %v1893
    %v1900 = vshrl.u32 2131351028, %v1894
    %v1901 = vor.u32 %v1899, %v1900
    %v1902 = vshll.u32 2131351028, %v1893
    %v1903 = vshrl.u32 2102212464, %v1894
    %v1904 = vor.u32 %v1902, %v1903
    %v1905 = vshll.u32 2102212464, %v1893
    %v1906 = vshrl.u32 920167782, %v1894
    %v1907 = vor.u32 %v1905, %v1906
    %v1908 = vshll.u32 920167782, %v1893
    %v1909 = vshrl.u32 1326507024, %v1894
    %v1910 = vor.u32 %v1908, %v1909
    %vm1911 = vcmp.lt.s32.totalorder %v1892, 1
    %vm1912 = vcmp.lt.s32.totalorder %v1892, 2
    %vm1913 = vcmp.lt.s32.totalorder %v1892, 3
    %vm1914 = vcmp.lt.s32.totalorder %v1892, 4
    %v1915 = vsel %vm1911, %v1895, %v1898
    %v1916 = vsel %vm1914, %v1904, 2102212464
    %v1917 = vsel %vm1913, %v1901, %v1916
    %v1918 = vsel %vm1912, %v1915, %v1917
    %v1919 = vsel %vm1911, %v1898, %v1901
    %v1920 = vsel %vm1914, %v1907, 920167782
    %v1921 = vsel %vm1913, %v1904, %v1920
    %v1922 = vsel %vm1912, %v1919, %v1921
    %v1923 = vsel %vm1911, %v1901, %v1904
    %v1924 = vsel %vm1914, %v1910, 1326507024
    %v1925 = vsel %vm1913, %v1907, %v1924
    %v1926 = vsel %vm1912, %v1923, %v1925
    %v1927 = vshll.u32 %v1887, 8
    %v1928 = vmul.u32.u64.compose %v1927, %v1926
    %v1929 = vextract.low.u32 %v1928
    %v1930 = vextract.high.u32 %v1928
    %v1931 = vmul.u32.u64.compose %v1927, %v1922
    %v1932 = vextract.low.u32 %v1931
    %v1933 = vextract.high.u32 %v1931
    %v1934 = vmul.u32 %v1927, %v1918
    %v1935 = vadd.s32 %v1930, %v1932
    %vm1936 = vc.u32 %v1930, %v1932
    %v1937 = vadd.s32 %v1933, 1
    %v1938 = vsel %vm1936, %v1937, %v1933
    %v1939 = vadd.s32 %v1934, %v1938
    %v1940 = vadd.s32 %v1939, 536870912
    %v1941 = vshrl.u32 %v1940, 30
    %v1942 = vshll.u32 %v1941, 30
    %v1943 = vsub.s32 %v1939, %v1942
    %vm1944 = vcmp.lt.s32.totalorder %v1943, 0
    %v1945 = vsub.s32 0, %v1943
    %v1946 = vsel %vm1944, %v1945, %v1943
    %v1947 = vclz %v1946
    %v1948 = vsub.s32 %v1947, 2
    %vm1949 = vcmp.gt.s32.totalorder 0, %v1948
    %v1950 = vsel %vm1949, 0, %v1948
    %v1951 = vsub.s32 32, %v1950
    %v1952 = vshll.u32 %v1943, %v1950
    %v1953 = vshrl.u32 %v1935, %v1951
    %v1954 = vor.u32 %v1952, %v1953
    %v1955 = vsub.s32 4294967266, %v1950
    %v1956 = vadd.s32 %v1955, 127
    %v1957 = vshll.u32 %v1956, 23
    %v1958 = vor.u32 4788187, %v1957
    %v1959 = vand.u32 2147483647, %v1958
    %v1961 = vcvt.s32.f32 %v1954
    %v1962 = vmul.f32 %v1961, %v1959
    %v1963 = vxor.u32 %v1962, 2147483648
    %v1964 = vsel %vm1881, %v1963, %v1962
    %v1965 = vsub.s32 4, %v1941
    %v1966 = vsel %vm1881, %v1965, %v1941
    %v1967 = vsel %vm1880, %v310, %v1964
    %v1968 = vsel %vm1880, 0, %v1966
    %v1969 = vcosq.f32.pop %v1967
    %v1970 = vsinq.f32.pop %v1967
    %vm1971 = vweird.f32 %v310
    %v1972 = vadd.s32 %v1968, 3
    %v1973 = vand.u32 %v1972, 3
    %vm1974 = vcmp.lt.s32.totalorder %v1973, 2
    %vm1975 = vcmp.eq.s32.totalorder %v1973, 0
    %v1976 = vxor.u32 %v1970, 2147483648
    %v1977 = vsel %vm1975, %v1969, %v1976
    %vm1978 = vcmp.eq.s32.totalorder %v1973, 2
    %v1979 = vxor.u32 %v1969, 2147483648
    %v1980 = vsel %vm1978, %v1979, %v1970
    %v1981 = vsel %vm1974, %v1977, %v1980
    %v1982 = vsel %vm1971, nan, %v1981
    %v1983 = vmul.f32 %v288, %v1254
    %v1984 = vmul.f32 %v290, %v1358
    %v1985 = vmul.f32 %v292, %v1462
    %v1986 = vmul.f32 %v294, %v1566
    %v1987 = vmul.f32 %v296, %v1670
    %v1988 = vmul.f32 %v298, %v1774
    %v1989 = vmul.f32 %v300, %v1878
    %v1990 = vmul.f32 %v302, %v1982
    %1991 = vst [vmem:[#allocation5 + $0x40] sm:$0xff] %v1983
    %1992 = vst [vmem:[#allocation5 + $0x48] sm:$0xff] %v1984
    %1993 = vst [vmem:[#allocation5 + $0x50] sm:$0xff] %v1985
    %1994 = vst [vmem:[#allocation5 + $0x58] sm:$0xff] %v1986
    %1995 = vst [vmem:[#allocation5 + $0x60] sm:$0xff] %v1987
    %1996 = vst [vmem:[#allocation5 + $0x68] sm:$0xff] %v1988
    %1997 = vst [vmem:[#allocation5 + $0x70] sm:$0xff] %v1989
    %1998 = vst [vmem:[#allocation5 + $0x78] sm:$0xff] %v1990
    // Predicated region
    $region18: #{tpu_custom_call.1} parent=1 // pred_check
      _
    $region19: #{tpu_custom_call.1} parent=1 // pred_check_branch
      %2000 = sbr.rel (0) target = $region21
    $region20: #{tpu_custom_call.1} parent=1 // pred_region
      %s2002 = ssub.s32 2048, 2048
      %2003 = vsyncadd [#allocation4], %s2002
      %s2004 = sshll.u32 [#allocation5], 4
      %s2005 = int_to_ptr.vmem [resolvable:$true] %s2004
      %2010 = dma.vmem_to_hbm [thread:$0]  %s2005, 2048, %s3, [#allocation4], 256, 256, 16
    $region21: #{tpu_custom_call.1} parent=1 // pred_fallthru
      _
    // Predicated region
    $region22: #{tpu_custom_call.1} parent=1 // pred_check
      _
    $region23: #{tpu_custom_call.1} parent=1 // pred_check_branch
      %2012 = sbr.rel (0) target = $region25
    $region24: #{tpu_custom_call.1} parent=1 // pred_region
      %2013 = dma.done [#allocation4], 2048
    $region25: #{tpu_custom_call.1} parent=1 // pred_fallthru
      _
    %2014 = vsyncpa [#allocation3], 1
    %2015 = vsyncpa [#allocation4], 1

</llo_original>
